<compile_context>
chip_gen: v6e
topology: v6e:2x2x1
jax: 0.10.0
libtpu: 0.0.40
codegen_flags: <defaults>
</compile_context>

<pallas_src>
import jax
import jax.numpy as jnp
from jax.experimental import pallas as pl
from jax.experimental.pallas import tpu as pltpu

HIDDEN = 32          # hidden_size
NUM_LAYERS = 2       # fixed to 2 (layers are unrolled explicitly)
INPUT_SIZE = 1


def _lstm_fc_kernel(x_ref,            # (T, B)       time-major input (layout plumbing)
                    w_ih0_ref,        # (1, 4H)      layer-0 input weights
                    b0_ref,           # (1, 4H)      b_ih_l0 + b_hh_l0
                    w_hh_ref,         # (2H, 8H)     block-diag [w_hh0 | w_hh1]
                    w_ih1_ref,        # (H, 4H)      layer-1 input weights
                    b1_ref,           # (1, 4H)      b_ih_l1 + b_hh_l1
                    w_fc_ref,         # (H, 1)
                    b_fc_ref,         # (1, 1)
                    out_ref):         # (B, 1)
    T, B = x_ref.shape
    H = HIDDEN
    G = 4 * H                         # 128 gate lanes per layer: [i | f | g | o]

    x_tb = x_ref[...]                 # (T, B)
    w_ih0 = w_ih0_ref[...]            # (1, G)
    b0 = b0_ref[...]                  # (1, G)
    w_hh = w_hh_ref[...]              # (2H, 2G)
    w_ih1 = w_ih1_ref[...]            # (H, G)
    # Hoisted broadcast (JAX does not CSE broadcast_in_dim inside the unrolled loop).
    b1 = jnp.broadcast_to(b1_ref[...], (B, G))

    # Hoisted layer-0 input projection + bias: one broadcast-multiply for all T steps.
    x_contrib = x_tb[:, :, None] * w_ih0[None] + b0[None]          # (T, B, G)

    def cell(gates, c_prev):
        # gates: (B, G) full pre-activation in PyTorch order [i | f | g | o].
        # Two full-vreg EUP activations, then cheap lane slices.
        sig = jax.nn.sigmoid(gates)                    # i, f, o (and unused g lanes)
        th = jnp.tanh(gates)                           # g (and unused lanes)
        i = sig[:, 0 * H:1 * H]
        f = sig[:, 1 * H:2 * H]
        g = th[:, 2 * H:3 * H]
        o = sig[:, 3 * H:4 * H]
        c_new = f * c_prev + i * g                     # (B, H)
        h_new = o * jnp.tanh(c_new)                    # (B, H)
        return h_new, c_new

    h_cat = jnp.zeros((B, 2 * H), jnp.float32)         # [h0 | h1] from the previous step
    c0 = jnp.zeros((B, H), jnp.float32)
    c1 = jnp.zeros((B, H), jnp.float32)
    h1_c = jnp.zeros((B, H), jnp.float32)

    # T is small and static -> fully unrolled at trace time.
    for t in range(T):
        # One fused MXU push for both recurrent matmuls (block-diagonal weights):
        # lanes [0, G) = h0_prev @ w_hh0, lanes [G, 2G) = h1_prev @ w_hh1.
        hh = jnp.dot(h_cat, w_hh, preferred_element_type=jnp.float32)   # (B, 2G)

        # layer 0
        h0_c, c0 = cell(x_contrib[t] + hh[:, :G], c0)

        # layer 1 (input is the *new* h0)
        gates1 = (jnp.dot(h0_c, w_ih1, preferred_element_type=jnp.float32)
                  + hh[:, G:] + b1)
        h1_c, c1 = cell(gates1, c1)

        h_cat = jnp.concatenate([h0_c, h1_c], axis=1)  # (B, 2H) state for next step

    # fc on the last timestep's top-layer hidden state.
    out_ref[...] = (jnp.dot(h1_c, w_fc_ref[...], preferred_element_type=jnp.float32)
                    + b_fc_ref[...])                   # (B, 1)


def init_params(key, hidden=HIDDEN):
    """Deterministic synthetic params, PyTorch-default-like uniform(-1/sqrt(H), 1/sqrt(H)).

    Note: real PyTorch weights ((4H, in) layout) must be transposed to (in, 4H) and the
    two biases summed before feeding this kernel.
    """
    k = 1.0 / jnp.sqrt(jnp.float32(hidden))
    keys = jax.random.split(key, 10)
    u = lambda kk, shape: jax.random.uniform(kk, shape, jnp.float32, -k, k)
    return {
        "w_ih0": u(keys[0], (INPUT_SIZE, 4 * hidden)),
        "w_hh0": u(keys[1], (hidden, 4 * hidden)),
        "b0":    u(keys[2], (1, 4 * hidden)) + u(keys[3], (1, 4 * hidden)),  # b_ih + b_hh
        "w_ih1": u(keys[4], (hidden, 4 * hidden)),
        "w_hh1": u(keys[5], (hidden, 4 * hidden)),
        "b1":    u(keys[6], (1, 4 * hidden)) + u(keys[7], (1, 4 * hidden)),
        "w_fc":  u(keys[8], (hidden, 1)),
        "b_fc":  u(keys[9], (1, 1)),
    }


def pack_recurrent_weights(params, hidden=HIDDEN):
    """Block-diagonal (2H, 8H) packing of w_hh0 / w_hh1 -> one fused MXU push per step."""
    H = hidden
    w_hh = jnp.zeros((2 * H, 8 * H), jnp.float32)
    w_hh = w_hh.at[:H, :4 * H].set(params["w_hh0"])
    w_hh = w_hh.at[H:, 4 * H:].set(params["w_hh1"])
    return w_hh


@jax.jit
def electricity_net_forward(x, params):
    """x: (B, T) float32 -> (B,) float32 (matches out.squeeze(1) in PyTorch)."""
    B, T = x.shape
    H = HIDDEN

    # Pad batch to the 8-row sublane width; additional batch (up to ~128-256 rows) is
    # essentially free — the recurrence is latency-bound.
    B_pad = max(8, ((B + 7) // 8) * 8)
    x_pad = jnp.pad(x.astype(jnp.float32), ((0, B_pad - B), (0, 0)))
    x_tb = x_pad.T                                      # (T, B_pad): layout plumbing only

    w_hh = pack_recurrent_weights(params, H)            # one-time weight packing

    vmem = pl.BlockSpec(memory_space=pltpu.MemorySpace.VMEM)
    out = pl.pallas_call(
        _lstm_fc_kernel,
        out_shape=jax.ShapeDtypeStruct((B_pad, 1), jnp.float32),
        in_specs=[vmem] * 8,          # everything (~100 KB) resident in VMEM; no grid
        out_specs=vmem,
    )(x_tb,
      params["w_ih0"], params["b0"], w_hh,
      params["w_ih1"], params["b1"],
      params["w_fc"], params["b_fc"])
    return out[:B, 0]                 # drop batch padding + squeeze(1)


def electricity_net_reference(x, params):
    """Pure-JAX reference with the same math as the PyTorch module (for validation)."""
    B, T = x.shape
    H = HIDDEN
    h0 = jnp.zeros((B, H), jnp.float32)
    c0 = jnp.zeros((B, H), jnp.float32)
    h1 = jnp.zeros((B, H), jnp.float32)
    c1 = jnp.zeros((B, H), jnp.float32)

    def cell(gates, c):
        i = jax.nn.sigmoid(gates[:, 0 * H:1 * H])
        f = jax.nn.sigmoid(gates[:, 1 * H:2 * H])
        g = jnp.tanh(gates[:, 2 * H:3 * H])
        o = jax.nn.sigmoid(gates[:, 3 * H:4 * H])
        c_new = f * c + i * g
        return o * jnp.tanh(c_new), c_new

    for t in range(T):
        x_t = x[:, t:t + 1]
        g0 = x_t * params["w_ih0"] + h0 @ params["w_hh0"] + params["b0"]
        h0, c0 = cell(g0, c0)
        g1 = h0 @ params["w_ih1"] + h1 @ params["w_hh1"] + params["b1"]
        h1, c1 = cell(g1, c1)
    return (h1 @ params["w_fc"] + params["b_fc"]).reshape(B)


if __name__ == "__main__":
    key = jax.random.PRNGKey(0)
    kx, kp = jax.random.split(key)
    B, T = 2, 8                       # small batch / sequence length
    x = jax.random.normal(kx, (B, T), dtype=jnp.float32)
    params = init_params(kp)

    y = electricity_net_forward(x, params)
    y = jax.block_until_ready(y)
    assert y.shape == (B,) and y.dtype == jnp.float32

    y_ref = electricity_net_reference(x, params)
    assert jnp.allclose(y, y_ref, rtol=1e-4, atol=1e-4), (y, y_ref)
    print("KERNEL_OK")
</pallas_src>

<mosaic_0001>
module attributes {stable_mosaic.version = 11 : i64} {
  func.func @_lstm_fc_kernel(%arg0: memref<8x8xf32, #tpu.memory_space<vmem>>, %arg1: memref<1x128xf32, #tpu.memory_space<vmem>>, %arg2: memref<1x128xf32, #tpu.memory_space<vmem>>, %arg3: memref<64x256xf32, #tpu.memory_space<vmem>>, %arg4: memref<32x128xf32, #tpu.memory_space<vmem>>, %arg5: memref<1x128xf32, #tpu.memory_space<vmem>>, %arg6: memref<32x1xf32, #tpu.memory_space<vmem>>, %arg7: memref<1x1xf32, #tpu.memory_space<vmem>>, %arg8: memref<8x1xf32, #tpu.memory_space<vmem>>) attributes {dimension_semantics = [], scalar_prefetch = 0 : i64, scratch_operands = 0 : i64, tpu.core_type = #tpu.core_type<tc>} {
    %c0 = arith.constant 0 : index
    %c0_0 = arith.constant 0 : index
    %0 = vector.load %arg0[%c0, %c0_0] : memref<8x8xf32, #tpu.memory_space<vmem>>, vector<8x8xf32>
    %c0_1 = arith.constant 0 : index
    %c0_2 = arith.constant 0 : index
    %1 = vector.load %arg1[%c0_1, %c0_2] : memref<1x128xf32, #tpu.memory_space<vmem>>, vector<1x128xf32>
    %c0_3 = arith.constant 0 : index
    %c0_4 = arith.constant 0 : index
    %2 = vector.load %arg2[%c0_3, %c0_4] : memref<1x128xf32, #tpu.memory_space<vmem>>, vector<1x128xf32>
    %c0_5 = arith.constant 0 : index
    %c0_6 = arith.constant 0 : index
    %3 = vector.load %arg3[%c0_5, %c0_6] : memref<64x256xf32, #tpu.memory_space<vmem>>, vector<64x256xf32>
    %c0_7 = arith.constant 0 : index
    %c0_8 = arith.constant 0 : index
    %4 = vector.load %arg4[%c0_7, %c0_8] : memref<32x128xf32, #tpu.memory_space<vmem>>, vector<32x128xf32>
    %c0_9 = arith.constant 0 : index
    %c0_10 = arith.constant 0 : index
    %5 = vector.load %arg5[%c0_9, %c0_10] : memref<1x128xf32, #tpu.memory_space<vmem>>, vector<1x128xf32>
    %6 = vector.shape_cast %5 : vector<1x128xf32> to vector<1x128xf32>
    %7 = vector.broadcast %6 : vector<1x128xf32> to vector<8x128xf32>
    %8 = vector.shape_cast %0 : vector<8x8xf32> to vector<8x8x1xf32>
    %9 = vector.shape_cast %1 : vector<1x128xf32> to vector<1x1x128xf32>
    %10 = vector.broadcast %8 : vector<8x8x1xf32> to vector<8x8x128xf32>
    %11 = vector.broadcast %9 : vector<1x1x128xf32> to vector<8x8x128xf32>
    %12 = arith.mulf %10, %11 : vector<8x8x128xf32>
    %13 = vector.shape_cast %2 : vector<1x128xf32> to vector<1x1x128xf32>
    %14 = vector.broadcast %13 : vector<1x1x128xf32> to vector<8x8x128xf32>
    %15 = arith.addf %12, %14 : vector<8x8x128xf32>
    %cst = arith.constant 0.000000e+00 : f32
    %16 = vector.broadcast %cst : f32 to vector<8x64xf32>
    %cst_11 = arith.constant 0.000000e+00 : f32
    %17 = vector.broadcast %cst_11 : f32 to vector<8x32xf32>
    %cst_12 = arith.constant 0.000000e+00 : f32
    %18 = vector.broadcast %cst_12 : f32 to vector<8x32xf32>
    %cst_13 = arith.constant dense<0.000000e+00> : vector<8x256xf32>
    %19 = tpu.matmul %16, %3, %cst_13 {dimension_numbers = #tpu.dot_dimension_numbers<[1], [0], [0], [1], [0, 0, 1, 1], [], []>} : vector<8x64xf32>, vector<64x256xf32>, vector<8x256xf32> -> vector<8x256xf32>
    %20 = vector.extract_strided_slice %15 {offsets = [0, 0, 0], sizes = [1, 8, 128], strides = [1, 1, 1]} : vector<8x8x128xf32> to vector<1x8x128xf32>
    %21 = vector.shape_cast %20 : vector<1x8x128xf32> to vector<8x128xf32>
    %22 = vector.extract_strided_slice %19 {offsets = [0, 0], sizes = [8, 128], strides = [1, 1]} : vector<8x256xf32> to vector<8x128xf32>
    %23 = arith.addf %21, %22 : vector<8x128xf32>
    %24 = arith.negf %23 : vector<8x128xf32>
    %25 = math.exp %24 : vector<8x128xf32>
    %cst_14 = arith.constant 1.000000e+00 : f32
    %26 = vector.broadcast %cst_14 : f32 to vector<8x128xf32>
    %27 = arith.addf %26, %25 : vector<8x128xf32>
    %28 = arith.divf %26, %27 : vector<8x128xf32>
    %29 = math.tanh %23 : vector<8x128xf32>
    %30 = vector.extract_strided_slice %28 {offsets = [0, 0], sizes = [8, 32], strides = [1, 1]} : vector<8x128xf32> to vector<8x32xf32>
    %31 = vector.extract_strided_slice %28 {offsets = [0, 32], sizes = [8, 32], strides = [1, 1]} : vector<8x128xf32> to vector<8x32xf32>
    %32 = vector.extract_strided_slice %29 {offsets = [0, 64], sizes = [8, 32], strides = [1, 1]} : vector<8x128xf32> to vector<8x32xf32>
    %33 = vector.extract_strided_slice %28 {offsets = [0, 96], sizes = [8, 32], strides = [1, 1]} : vector<8x128xf32> to vector<8x32xf32>
    %34 = arith.mulf %31, %17 : vector<8x32xf32>
    %35 = arith.mulf %30, %32 : vector<8x32xf32>
    %36 = arith.addf %34, %35 : vector<8x32xf32>
    %37 = math.tanh %36 : vector<8x32xf32>
    %38 = arith.mulf %33, %37 : vector<8x32xf32>
    %cst_15 = arith.constant dense<0.000000e+00> : vector<8x128xf32>
    %39 = tpu.matmul %38, %4, %cst_15 {dimension_numbers = #tpu.dot_dimension_numbers<[1], [0], [0], [1], [0, 0, 1, 1], [], []>} : vector<8x32xf32>, vector<32x128xf32>, vector<8x128xf32> -> vector<8x128xf32>
    %40 = vector.extract_strided_slice %19 {offsets = [0, 128], sizes = [8, 128], strides = [1, 1]} : vector<8x256xf32> to vector<8x128xf32>
    %41 = arith.addf %39, %40 : vector<8x128xf32>
    %42 = arith.addf %41, %7 : vector<8x128xf32>
    %43 = arith.negf %42 : vector<8x128xf32>
    %44 = math.exp %43 : vector<8x128xf32>
    %cst_16 = arith.constant 1.000000e+00 : f32
    %45 = vector.broadcast %cst_16 : f32 to vector<8x128xf32>
    %46 = arith.addf %45, %44 : vector<8x128xf32>
    %47 = arith.divf %45, %46 : vector<8x128xf32>
    %48 = math.tanh %42 : vector<8x128xf32>
    %49 = vector.extract_strided_slice %47 {offsets = [0, 0], sizes = [8, 32], strides = [1, 1]} : vector<8x128xf32> to vector<8x32xf32>
    %50 = vector.extract_strided_slice %47 {offsets = [0, 32], sizes = [8, 32], strides = [1, 1]} : vector<8x128xf32> to vector<8x32xf32>
    %51 = vector.extract_strided_slice %48 {offsets = [0, 64], sizes = [8, 32], strides = [1, 1]} : vector<8x128xf32> to vector<8x32xf32>
    %52 = vector.extract_strided_slice %47 {offsets = [0, 96], sizes = [8, 32], strides = [1, 1]} : vector<8x128xf32> to vector<8x32xf32>
    %53 = arith.mulf %50, %18 : vector<8x32xf32>
    %54 = arith.mulf %49, %51 : vector<8x32xf32>
    %55 = arith.addf %53, %54 : vector<8x32xf32>
    %56 = math.tanh %55 : vector<8x32xf32>
    %57 = arith.mulf %52, %56 : vector<8x32xf32>
    %58 = tpu.concatenate %38, %57 in 1 : vector<8x32xf32>, vector<8x32xf32> -> vector<8x64xf32>
    %cst_17 = arith.constant dense<0.000000e+00> : vector<8x256xf32>
    %59 = tpu.matmul %58, %3, %cst_17 {dimension_numbers = #tpu.dot_dimension_numbers<[1], [0], [0], [1], [0, 0, 1, 1], [], []>} : vector<8x64xf32>, vector<64x256xf32>, vector<8x256xf32> -> vector<8x256xf32>
    %60 = vector.extract_strided_slice %15 {offsets = [1, 0, 0], sizes = [1, 8, 128], strides = [1, 1, 1]} : vector<8x8x128xf32> to vector<1x8x128xf32>
    %61 = vector.shape_cast %60 : vector<1x8x128xf32> to vector<8x128xf32>
    %62 = vector.extract_strided_slice %59 {offsets = [0, 0], sizes = [8, 128], strides = [1, 1]} : vector<8x256xf32> to vector<8x128xf32>
    %63 = arith.addf %61, %62 : vector<8x128xf32>
    %64 = arith.negf %63 : vector<8x128xf32>
    %65 = math.exp %64 : vector<8x128xf32>
    %cst_18 = arith.constant 1.000000e+00 : f32
    %66 = vector.broadcast %cst_18 : f32 to vector<8x128xf32>
    %67 = arith.addf %66, %65 : vector<8x128xf32>
    %68 = arith.divf %66, %67 : vector<8x128xf32>
    %69 = math.tanh %63 : vector<8x128xf32>
    %70 = vector.extract_strided_slice %68 {offsets = [0, 0], sizes = [8, 32], strides = [1, 1]} : vector<8x128xf32> to vector<8x32xf32>
    %71 = vector.extract_strided_slice %68 {offsets = [0, 32], sizes = [8, 32], strides = [1, 1]} : vector<8x128xf32> to vector<8x32xf32>
    %72 = vector.extract_strided_slice %69 {offsets = [0, 64], sizes = [8, 32], strides = [1, 1]} : vector<8x128xf32> to vector<8x32xf32>
    %73 = vector.extract_strided_slice %68 {offsets = [0, 96], sizes = [8, 32], strides = [1, 1]} : vector<8x128xf32> to vector<8x32xf32>
    %74 = arith.mulf %71, %36 : vector<8x32xf32>
    %75 = arith.mulf %70, %72 : vector<8x32xf32>
    %76 = arith.addf %74, %75 : vector<8x32xf32>
    %77 = math.tanh %76 : vector<8x32xf32>
    %78 = arith.mulf %73, %77 : vector<8x32xf32>
    %cst_19 = arith.constant dense<0.000000e+00> : vector<8x128xf32>
    %79 = tpu.matmul %78, %4, %cst_19 {dimension_numbers = #tpu.dot_dimension_numbers<[1], [0], [0], [1], [0, 0, 1, 1], [], []>} : vector<8x32xf32>, vector<32x128xf32>, vector<8x128xf32> -> vector<8x128xf32>
    %80 = vector.extract_strided_slice %59 {offsets = [0, 128], sizes = [8, 128], strides = [1, 1]} : vector<8x256xf32> to vector<8x128xf32>
    %81 = arith.addf %79, %80 : vector<8x128xf32>
    %82 = arith.addf %81, %7 : vector<8x128xf32>
    %83 = arith.negf %82 : vector<8x128xf32>
    %84 = math.exp %83 : vector<8x128xf32>
    %cst_20 = arith.constant 1.000000e+00 : f32
    %85 = vector.broadcast %cst_20 : f32 to vector<8x128xf32>
    %86 = arith.addf %85, %84 : vector<8x128xf32>
    %87 = arith.divf %85, %86 : vector<8x128xf32>
    %88 = math.tanh %82 : vector<8x128xf32>
    %89 = vector.extract_strided_slice %87 {offsets = [0, 0], sizes = [8, 32], strides = [1, 1]} : vector<8x128xf32> to vector<8x32xf32>
    %90 = vector.extract_strided_slice %87 {offsets = [0, 32], sizes = [8, 32], strides = [1, 1]} : vector<8x128xf32> to vector<8x32xf32>
    %91 = vector.extract_strided_slice %88 {offsets = [0, 64], sizes = [8, 32], strides = [1, 1]} : vector<8x128xf32> to vector<8x32xf32>
    %92 = vector.extract_strided_slice %87 {offsets = [0, 96], sizes = [8, 32], strides = [1, 1]} : vector<8x128xf32> to vector<8x32xf32>
    %93 = arith.mulf %90, %55 : vector<8x32xf32>
    %94 = arith.mulf %89, %91 : vector<8x32xf32>
    %95 = arith.addf %93, %94 : vector<8x32xf32>
    %96 = math.tanh %95 : vector<8x32xf32>
    %97 = arith.mulf %92, %96 : vector<8x32xf32>
    %98 = tpu.concatenate %78, %97 in 1 : vector<8x32xf32>, vector<8x32xf32> -> vector<8x64xf32>
    %cst_21 = arith.constant dense<0.000000e+00> : vector<8x256xf32>
    %99 = tpu.matmul %98, %3, %cst_21 {dimension_numbers = #tpu.dot_dimension_numbers<[1], [0], [0], [1], [0, 0, 1, 1], [], []>} : vector<8x64xf32>, vector<64x256xf32>, vector<8x256xf32> -> vector<8x256xf32>
    %100 = vector.extract_strided_slice %15 {offsets = [2, 0, 0], sizes = [1, 8, 128], strides = [1, 1, 1]} : vector<8x8x128xf32> to vector<1x8x128xf32>
    %101 = vector.shape_cast %100 : vector<1x8x128xf32> to vector<8x128xf32>
    %102 = vector.extract_strided_slice %99 {offsets = [0, 0], sizes = [8, 128], strides = [1, 1]} : vector<8x256xf32> to vector<8x128xf32>
    %103 = arith.addf %101, %102 : vector<8x128xf32>
    %104 = arith.negf %103 : vector<8x128xf32>
    %105 = math.exp %104 : vector<8x128xf32>
    %cst_22 = arith.constant 1.000000e+00 : f32
    %106 = vector.broadcast %cst_22 : f32 to vector<8x128xf32>
    %107 = arith.addf %106, %105 : vector<8x128xf32>
    %108 = arith.divf %106, %107 : vector<8x128xf32>
    %109 = math.tanh %103 : vector<8x128xf32>
    %110 = vector.extract_strided_slice %108 {offsets = [0, 0], sizes = [8, 32], strides = [1, 1]} : vector<8x128xf32> to vector<8x32xf32>
    %111 = vector.extract_strided_slice %108 {offsets = [0, 32], sizes = [8, 32], strides = [1, 1]} : vector<8x128xf32> to vector<8x32xf32>
    %112 = vector.extract_strided_slice %109 {offsets = [0, 64], sizes = [8, 32], strides = [1, 1]} : vector<8x128xf32> to vector<8x32xf32>
    %113 = vector.extract_strided_slice %108 {offsets = [0, 96], sizes = [8, 32], strides = [1, 1]} : vector<8x128xf32> to vector<8x32xf32>
    %114 = arith.mulf %111, %76 : vector<8x32xf32>
    %115 = arith.mulf %110, %112 : vector<8x32xf32>
    %116 = arith.addf %114, %115 : vector<8x32xf32>
    %117 = math.tanh %116 : vector<8x32xf32>
    %118 = arith.mulf %113, %117 : vector<8x32xf32>
    %cst_23 = arith.constant dense<0.000000e+00> : vector<8x128xf32>
    %119 = tpu.matmul %118, %4, %cst_23 {dimension_numbers = #tpu.dot_dimension_numbers<[1], [0], [0], [1], [0, 0, 1, 1], [], []>} : vector<8x32xf32>, vector<32x128xf32>, vector<8x128xf32> -> vector<8x128xf32>
    %120 = vector.extract_strided_slice %99 {offsets = [0, 128], sizes = [8, 128], strides = [1, 1]} : vector<8x256xf32> to vector<8x128xf32>
    %121 = arith.addf %119, %120 : vector<8x128xf32>
    %122 = arith.addf %121, %7 : vector<8x128xf32>
    %123 = arith.negf %122 : vector<8x128xf32>
    %124 = math.exp %123 : vector<8x128xf32>
    %cst_24 = arith.constant 1.000000e+00 : f32
    %125 = vector.broadcast %cst_24 : f32 to vector<8x128xf32>
    %126 = arith.addf %125, %124 : vector<8x128xf32>
    %127 = arith.divf %125, %126 : vector<8x128xf32>
    %128 = math.tanh %122 : vector<8x128xf32>
    %129 = vector.extract_strided_slice %127 {offsets = [0, 0], sizes = [8, 32], strides = [1, 1]} : vector<8x128xf32> to vector<8x32xf32>
    %130 = vector.extract_strided_slice %127 {offsets = [0, 32], sizes = [8, 32], strides = [1, 1]} : vector<8x128xf32> to vector<8x32xf32>
    %131 = vector.extract_strided_slice %128 {offsets = [0, 64], sizes = [8, 32], strides = [1, 1]} : vector<8x128xf32> to vector<8x32xf32>
    %132 = vector.extract_strided_slice %127 {offsets = [0, 96], sizes = [8, 32], strides = [1, 1]} : vector<8x128xf32> to vector<8x32xf32>
    %133 = arith.mulf %130, %95 : vector<8x32xf32>
    %134 = arith.mulf %129, %131 : vector<8x32xf32>
    %135 = arith.addf %133, %134 : vector<8x32xf32>
    %136 = math.tanh %135 : vector<8x32xf32>
    %137 = arith.mulf %132, %136 : vector<8x32xf32>
    %138 = tpu.concatenate %118, %137 in 1 : vector<8x32xf32>, vector<8x32xf32> -> vector<8x64xf32>
    %cst_25 = arith.constant dense<0.000000e+00> : vector<8x256xf32>
    %139 = tpu.matmul %138, %3, %cst_25 {dimension_numbers = #tpu.dot_dimension_numbers<[1], [0], [0], [1], [0, 0, 1, 1], [], []>} : vector<8x64xf32>, vector<64x256xf32>, vector<8x256xf32> -> vector<8x256xf32>
    %140 = vector.extract_strided_slice %15 {offsets = [3, 0, 0], sizes = [1, 8, 128], strides = [1, 1, 1]} : vector<8x8x128xf32> to vector<1x8x128xf32>
    %141 = vector.shape_cast %140 : vector<1x8x128xf32> to vector<8x128xf32>
    %142 = vector.extract_strided_slice %139 {offsets = [0, 0], sizes = [8, 128], strides = [1, 1]} : vector<8x256xf32> to vector<8x128xf32>
    %143 = arith.addf %141, %142 : vector<8x128xf32>
    %144 = arith.negf %143 : vector<8x128xf32>
    %145 = math.exp %144 : vector<8x128xf32>
    %cst_26 = arith.constant 1.000000e+00 : f32
    %146 = vector.broadcast %cst_26 : f32 to vector<8x128xf32>
    %147 = arith.addf %146, %145 : vector<8x128xf32>
    %148 = arith.divf %146, %147 : vector<8x128xf32>
    %149 = math.tanh %143 : vector<8x128xf32>
    %150 = vector.extract_strided_slice %148 {offsets = [0, 0], sizes = [8, 32], strides = [1, 1]} : vector<8x128xf32> to vector<8x32xf32>
    %151 = vector.extract_strided_slice %148 {offsets = [0, 32], sizes = [8, 32], strides = [1, 1]} : vector<8x128xf32> to vector<8x32xf32>
    %152 = vector.extract_strided_slice %149 {offsets = [0, 64], sizes = [8, 32], strides = [1, 1]} : vector<8x128xf32> to vector<8x32xf32>
    %153 = vector.extract_strided_slice %148 {offsets = [0, 96], sizes = [8, 32], strides = [1, 1]} : vector<8x128xf32> to vector<8x32xf32>
    %154 = arith.mulf %151, %116 : vector<8x32xf32>
    %155 = arith.mulf %150, %152 : vector<8x32xf32>
    %156 = arith.addf %154, %155 : vector<8x32xf32>
    %157 = math.tanh %156 : vector<8x32xf32>
    %158 = arith.mulf %153, %157 : vector<8x32xf32>
    %cst_27 = arith.constant dense<0.000000e+00> : vector<8x128xf32>
    %159 = tpu.matmul %158, %4, %cst_27 {dimension_numbers = #tpu.dot_dimension_numbers<[1], [0], [0], [1], [0, 0, 1, 1], [], []>} : vector<8x32xf32>, vector<32x128xf32>, vector<8x128xf32> -> vector<8x128xf32>
    %160 = vector.extract_strided_slice %139 {offsets = [0, 128], sizes = [8, 128], strides = [1, 1]} : vector<8x256xf32> to vector<8x128xf32>
    %161 = arith.addf %159, %160 : vector<8x128xf32>
    %162 = arith.addf %161, %7 : vector<8x128xf32>
    %163 = arith.negf %162 : vector<8x128xf32>
    %164 = math.exp %163 : vector<8x128xf32>
    %cst_28 = arith.constant 1.000000e+00 : f32
    %165 = vector.broadcast %cst_28 : f32 to vector<8x128xf32>
    %166 = arith.addf %165, %164 : vector<8x128xf32>
    %167 = arith.divf %165, %166 : vector<8x128xf32>
    %168 = math.tanh %162 : vector<8x128xf32>
    %169 = vector.extract_strided_slice %167 {offsets = [0, 0], sizes = [8, 32], strides = [1, 1]} : vector<8x128xf32> to vector<8x32xf32>
    %170 = vector.extract_strided_slice %167 {offsets = [0, 32], sizes = [8, 32], strides = [1, 1]} : vector<8x128xf32> to vector<8x32xf32>
    %171 = vector.extract_strided_slice %168 {offsets = [0, 64], sizes = [8, 32], strides = [1, 1]} : vector<8x128xf32> to vector<8x32xf32>
    %172 = vector.extract_strided_slice %167 {offsets = [0, 96], sizes = [8, 32], strides = [1, 1]} : vector<8x128xf32> to vector<8x32xf32>
    %173 = arith.mulf %170, %135 : vector<8x32xf32>
    %174 = arith.mulf %169, %171 : vector<8x32xf32>
    %175 = arith.addf %173, %174 : vector<8x32xf32>
    %176 = math.tanh %175 : vector<8x32xf32>
    %177 = arith.mulf %172, %176 : vector<8x32xf32>
    %178 = tpu.concatenate %158, %177 in 1 : vector<8x32xf32>, vector<8x32xf32> -> vector<8x64xf32>
    %cst_29 = arith.constant dense<0.000000e+00> : vector<8x256xf32>
    %179 = tpu.matmul %178, %3, %cst_29 {dimension_numbers = #tpu.dot_dimension_numbers<[1], [0], [0], [1], [0, 0, 1, 1], [], []>} : vector<8x64xf32>, vector<64x256xf32>, vector<8x256xf32> -> vector<8x256xf32>
    %180 = vector.extract_strided_slice %15 {offsets = [4, 0, 0], sizes = [1, 8, 128], strides = [1, 1, 1]} : vector<8x8x128xf32> to vector<1x8x128xf32>
    %181 = vector.shape_cast %180 : vector<1x8x128xf32> to vector<8x128xf32>
    %182 = vector.extract_strided_slice %179 {offsets = [0, 0], sizes = [8, 128], strides = [1, 1]} : vector<8x256xf32> to vector<8x128xf32>
    %183 = arith.addf %181, %182 : vector<8x128xf32>
    %184 = arith.negf %183 : vector<8x128xf32>
    %185 = math.exp %184 : vector<8x128xf32>
    %cst_30 = arith.constant 1.000000e+00 : f32
    %186 = vector.broadcast %cst_30 : f32 to vector<8x128xf32>
    %187 = arith.addf %186, %185 : vector<8x128xf32>
    %188 = arith.divf %186, %187 : vector<8x128xf32>
    %189 = math.tanh %183 : vector<8x128xf32>
    %190 = vector.extract_strided_slice %188 {offsets = [0, 0], sizes = [8, 32], strides = [1, 1]} : vector<8x128xf32> to vector<8x32xf32>
    %191 = vector.extract_strided_slice %188 {offsets = [0, 32], sizes = [8, 32], strides = [1, 1]} : vector<8x128xf32> to vector<8x32xf32>
    %192 = vector.extract_strided_slice %189 {offsets = [0, 64], sizes = [8, 32], strides = [1, 1]} : vector<8x128xf32> to vector<8x32xf32>
    %193 = vector.extract_strided_slice %188 {offsets = [0, 96], sizes = [8, 32], strides = [1, 1]} : vector<8x128xf32> to vector<8x32xf32>
    %194 = arith.mulf %191, %156 : vector<8x32xf32>
    %195 = arith.mulf %190, %192 : vector<8x32xf32>
    %196 = arith.addf %194, %195 : vector<8x32xf32>
    %197 = math.tanh %196 : vector<8x32xf32>
    %198 = arith.mulf %193, %197 : vector<8x32xf32>
    %cst_31 = arith.constant dense<0.000000e+00> : vector<8x128xf32>
    %199 = tpu.matmul %198, %4, %cst_31 {dimension_numbers = #tpu.dot_dimension_numbers<[1], [0], [0], [1], [0, 0, 1, 1], [], []>} : vector<8x32xf32>, vector<32x128xf32>, vector<8x128xf32> -> vector<8x128xf32>
    %200 = vector.extract_strided_slice %179 {offsets = [0, 128], sizes = [8, 128], strides = [1, 1]} : vector<8x256xf32> to vector<8x128xf32>
    %201 = arith.addf %199, %200 : vector<8x128xf32>
    %202 = arith.addf %201, %7 : vector<8x128xf32>
    %203 = arith.negf %202 : vector<8x128xf32>
    %204 = math.exp %203 : vector<8x128xf32>
    %cst_32 = arith.constant 1.000000e+00 : f32
    %205 = vector.broadcast %cst_32 : f32 to vector<8x128xf32>
    %206 = arith.addf %205, %204 : vector<8x128xf32>
    %207 = arith.divf %205, %206 : vector<8x128xf32>
    %208 = math.tanh %202 : vector<8x128xf32>
    %209 = vector.extract_strided_slice %207 {offsets = [0, 0], sizes = [8, 32], strides = [1, 1]} : vector<8x128xf32> to vector<8x32xf32>
    %210 = vector.extract_strided_slice %207 {offsets = [0, 32], sizes = [8, 32], strides = [1, 1]} : vector<8x128xf32> to vector<8x32xf32>
    %211 = vector.extract_strided_slice %208 {offsets = [0, 64], sizes = [8, 32], strides = [1, 1]} : vector<8x128xf32> to vector<8x32xf32>
    %212 = vector.extract_strided_slice %207 {offsets = [0, 96], sizes = [8, 32], strides = [1, 1]} : vector<8x128xf32> to vector<8x32xf32>
    %213 = arith.mulf %210, %175 : vector<8x32xf32>
    %214 = arith.mulf %209, %211 : vector<8x32xf32>
    %215 = arith.addf %213, %214 : vector<8x32xf32>
    %216 = math.tanh %215 : vector<8x32xf32>
    %217 = arith.mulf %212, %216 : vector<8x32xf32>
    %218 = tpu.concatenate %198, %217 in 1 : vector<8x32xf32>, vector<8x32xf32> -> vector<8x64xf32>
    %cst_33 = arith.constant dense<0.000000e+00> : vector<8x256xf32>
    %219 = tpu.matmul %218, %3, %cst_33 {dimension_numbers = #tpu.dot_dimension_numbers<[1], [0], [0], [1], [0, 0, 1, 1], [], []>} : vector<8x64xf32>, vector<64x256xf32>, vector<8x256xf32> -> vector<8x256xf32>
    %220 = vector.extract_strided_slice %15 {offsets = [5, 0, 0], sizes = [1, 8, 128], strides = [1, 1, 1]} : vector<8x8x128xf32> to vector<1x8x128xf32>
    %221 = vector.shape_cast %220 : vector<1x8x128xf32> to vector<8x128xf32>
    %222 = vector.extract_strided_slice %219 {offsets = [0, 0], sizes = [8, 128], strides = [1, 1]} : vector<8x256xf32> to vector<8x128xf32>
    %223 = arith.addf %221, %222 : vector<8x128xf32>
    %224 = arith.negf %223 : vector<8x128xf32>
    %225 = math.exp %224 : vector<8x128xf32>
    %cst_34 = arith.constant 1.000000e+00 : f32
    %226 = vector.broadcast %cst_34 : f32 to vector<8x128xf32>
    %227 = arith.addf %226, %225 : vector<8x128xf32>
    %228 = arith.divf %226, %227 : vector<8x128xf32>
    %229 = math.tanh %223 : vector<8x128xf32>
    %230 = vector.extract_strided_slice %228 {offsets = [0, 0], sizes = [8, 32], strides = [1, 1]} : vector<8x128xf32> to vector<8x32xf32>
    %231 = vector.extract_strided_slice %228 {offsets = [0, 32], sizes = [8, 32], strides = [1, 1]} : vector<8x128xf32> to vector<8x32xf32>
    %232 = vector.extract_strided_slice %229 {offsets = [0, 64], sizes = [8, 32], strides = [1, 1]} : vector<8x128xf32> to vector<8x32xf32>
    %233 = vector.extract_strided_slice %228 {offsets = [0, 96], sizes = [8, 32], strides = [1, 1]} : vector<8x128xf32> to vector<8x32xf32>
    %234 = arith.mulf %231, %196 : vector<8x32xf32>
    %235 = arith.mulf %230, %232 : vector<8x32xf32>
    %236 = arith.addf %234, %235 : vector<8x32xf32>
    %237 = math.tanh %236 : vector<8x32xf32>
    %238 = arith.mulf %233, %237 : vector<8x32xf32>
    %cst_35 = arith.constant dense<0.000000e+00> : vector<8x128xf32>
    %239 = tpu.matmul %238, %4, %cst_35 {dimension_numbers = #tpu.dot_dimension_numbers<[1], [0], [0], [1], [0, 0, 1, 1], [], []>} : vector<8x32xf32>, vector<32x128xf32>, vector<8x128xf32> -> vector<8x128xf32>
    %240 = vector.extract_strided_slice %219 {offsets = [0, 128], sizes = [8, 128], strides = [1, 1]} : vector<8x256xf32> to vector<8x128xf32>
    %241 = arith.addf %239, %240 : vector<8x128xf32>
    %242 = arith.addf %241, %7 : vector<8x128xf32>
    %243 = arith.negf %242 : vector<8x128xf32>
    %244 = math.exp %243 : vector<8x128xf32>
    %cst_36 = arith.constant 1.000000e+00 : f32
    %245 = vector.broadcast %cst_36 : f32 to vector<8x128xf32>
    %246 = arith.addf %245, %244 : vector<8x128xf32>
    %247 = arith.divf %245, %246 : vector<8x128xf32>
    %248 = math.tanh %242 : vector<8x128xf32>
    %249 = vector.extract_strided_slice %247 {offsets = [0, 0], sizes = [8, 32], strides = [1, 1]} : vector<8x128xf32> to vector<8x32xf32>
    %250 = vector.extract_strided_slice %247 {offsets = [0, 32], sizes = [8, 32], strides = [1, 1]} : vector<8x128xf32> to vector<8x32xf32>
    %251 = vector.extract_strided_slice %248 {offsets = [0, 64], sizes = [8, 32], strides = [1, 1]} : vector<8x128xf32> to vector<8x32xf32>
    %252 = vector.extract_strided_slice %247 {offsets = [0, 96], sizes = [8, 32], strides = [1, 1]} : vector<8x128xf32> to vector<8x32xf32>
    %253 = arith.mulf %250, %215 : vector<8x32xf32>
    %254 = arith.mulf %249, %251 : vector<8x32xf32>
    %255 = arith.addf %253, %254 : vector<8x32xf32>
    %256 = math.tanh %255 : vector<8x32xf32>
    %257 = arith.mulf %252, %256 : vector<8x32xf32>
    %258 = tpu.concatenate %238, %257 in 1 : vector<8x32xf32>, vector<8x32xf32> -> vector<8x64xf32>
    %cst_37 = arith.constant dense<0.000000e+00> : vector<8x256xf32>
    %259 = tpu.matmul %258, %3, %cst_37 {dimension_numbers = #tpu.dot_dimension_numbers<[1], [0], [0], [1], [0, 0, 1, 1], [], []>} : vector<8x64xf32>, vector<64x256xf32>, vector<8x256xf32> -> vector<8x256xf32>
    %260 = vector.extract_strided_slice %15 {offsets = [6, 0, 0], sizes = [1, 8, 128], strides = [1, 1, 1]} : vector<8x8x128xf32> to vector<1x8x128xf32>
    %261 = vector.shape_cast %260 : vector<1x8x128xf32> to vector<8x128xf32>
    %262 = vector.extract_strided_slice %259 {offsets = [0, 0], sizes = [8, 128], strides = [1, 1]} : vector<8x256xf32> to vector<8x128xf32>
    %263 = arith.addf %261, %262 : vector<8x128xf32>
    %264 = arith.negf %263 : vector<8x128xf32>
    %265 = math.exp %264 : vector<8x128xf32>
    %cst_38 = arith.constant 1.000000e+00 : f32
    %266 = vector.broadcast %cst_38 : f32 to vector<8x128xf32>
    %267 = arith.addf %266, %265 : vector<8x128xf32>
    %268 = arith.divf %266, %267 : vector<8x128xf32>
    %269 = math.tanh %263 : vector<8x128xf32>
    %270 = vector.extract_strided_slice %268 {offsets = [0, 0], sizes = [8, 32], strides = [1, 1]} : vector<8x128xf32> to vector<8x32xf32>
    %271 = vector.extract_strided_slice %268 {offsets = [0, 32], sizes = [8, 32], strides = [1, 1]} : vector<8x128xf32> to vector<8x32xf32>
    %272 = vector.extract_strided_slice %269 {offsets = [0, 64], sizes = [8, 32], strides = [1, 1]} : vector<8x128xf32> to vector<8x32xf32>
    %273 = vector.extract_strided_slice %268 {offsets = [0, 96], sizes = [8, 32], strides = [1, 1]} : vector<8x128xf32> to vector<8x32xf32>
    %274 = arith.mulf %271, %236 : vector<8x32xf32>
    %275 = arith.mulf %270, %272 : vector<8x32xf32>
    %276 = arith.addf %274, %275 : vector<8x32xf32>
    %277 = math.tanh %276 : vector<8x32xf32>
    %278 = arith.mulf %273, %277 : vector<8x32xf32>
    %cst_39 = arith.constant dense<0.000000e+00> : vector<8x128xf32>
    %279 = tpu.matmul %278, %4, %cst_39 {dimension_numbers = #tpu.dot_dimension_numbers<[1], [0], [0], [1], [0, 0, 1, 1], [], []>} : vector<8x32xf32>, vector<32x128xf32>, vector<8x128xf32> -> vector<8x128xf32>
    %280 = vector.extract_strided_slice %259 {offsets = [0, 128], sizes = [8, 128], strides = [1, 1]} : vector<8x256xf32> to vector<8x128xf32>
    %281 = arith.addf %279, %280 : vector<8x128xf32>
    %282 = arith.addf %281, %7 : vector<8x128xf32>
    %283 = arith.negf %282 : vector<8x128xf32>
    %284 = math.exp %283 : vector<8x128xf32>
    %cst_40 = arith.constant 1.000000e+00 : f32
    %285 = vector.broadcast %cst_40 : f32 to vector<8x128xf32>
    %286 = arith.addf %285, %284 : vector<8x128xf32>
    %287 = arith.divf %285, %286 : vector<8x128xf32>
    %288 = math.tanh %282 : vector<8x128xf32>
    %289 = vector.extract_strided_slice %287 {offsets = [0, 0], sizes = [8, 32], strides = [1, 1]} : vector<8x128xf32> to vector<8x32xf32>
    %290 = vector.extract_strided_slice %287 {offsets = [0, 32], sizes = [8, 32], strides = [1, 1]} : vector<8x128xf32> to vector<8x32xf32>
    %291 = vector.extract_strided_slice %288 {offsets = [0, 64], sizes = [8, 32], strides = [1, 1]} : vector<8x128xf32> to vector<8x32xf32>
    %292 = vector.extract_strided_slice %287 {offsets = [0, 96], sizes = [8, 32], strides = [1, 1]} : vector<8x128xf32> to vector<8x32xf32>
    %293 = arith.mulf %290, %255 : vector<8x32xf32>
    %294 = arith.mulf %289, %291 : vector<8x32xf32>
    %295 = arith.addf %293, %294 : vector<8x32xf32>
    %296 = math.tanh %295 : vector<8x32xf32>
    %297 = arith.mulf %292, %296 : vector<8x32xf32>
    %298 = tpu.concatenate %278, %297 in 1 : vector<8x32xf32>, vector<8x32xf32> -> vector<8x64xf32>
    %cst_41 = arith.constant dense<0.000000e+00> : vector<8x256xf32>
    %299 = tpu.matmul %298, %3, %cst_41 {dimension_numbers = #tpu.dot_dimension_numbers<[1], [0], [0], [1], [0, 0, 1, 1], [], []>} : vector<8x64xf32>, vector<64x256xf32>, vector<8x256xf32> -> vector<8x256xf32>
    %300 = vector.extract_strided_slice %15 {offsets = [7, 0, 0], sizes = [1, 8, 128], strides = [1, 1, 1]} : vector<8x8x128xf32> to vector<1x8x128xf32>
    %301 = vector.shape_cast %300 : vector<1x8x128xf32> to vector<8x128xf32>
    %302 = vector.extract_strided_slice %299 {offsets = [0, 0], sizes = [8, 128], strides = [1, 1]} : vector<8x256xf32> to vector<8x128xf32>
    %303 = arith.addf %301, %302 : vector<8x128xf32>
    %304 = arith.negf %303 : vector<8x128xf32>
    %305 = math.exp %304 : vector<8x128xf32>
    %cst_42 = arith.constant 1.000000e+00 : f32
    %306 = vector.broadcast %cst_42 : f32 to vector<8x128xf32>
    %307 = arith.addf %306, %305 : vector<8x128xf32>
    %308 = arith.divf %306, %307 : vector<8x128xf32>
    %309 = math.tanh %303 : vector<8x128xf32>
    %310 = vector.extract_strided_slice %308 {offsets = [0, 0], sizes = [8, 32], strides = [1, 1]} : vector<8x128xf32> to vector<8x32xf32>
    %311 = vector.extract_strided_slice %308 {offsets = [0, 32], sizes = [8, 32], strides = [1, 1]} : vector<8x128xf32> to vector<8x32xf32>
    %312 = vector.extract_strided_slice %309 {offsets = [0, 64], sizes = [8, 32], strides = [1, 1]} : vector<8x128xf32> to vector<8x32xf32>
    %313 = vector.extract_strided_slice %308 {offsets = [0, 96], sizes = [8, 32], strides = [1, 1]} : vector<8x128xf32> to vector<8x32xf32>
    %314 = arith.mulf %311, %276 : vector<8x32xf32>
    %315 = arith.mulf %310, %312 : vector<8x32xf32>
    %316 = arith.addf %314, %315 : vector<8x32xf32>
    %317 = math.tanh %316 : vector<8x32xf32>
    %318 = arith.mulf %313, %317 : vector<8x32xf32>
    %cst_43 = arith.constant dense<0.000000e+00> : vector<8x128xf32>
    %319 = tpu.matmul %318, %4, %cst_43 {dimension_numbers = #tpu.dot_dimension_numbers<[1], [0], [0], [1], [0, 0, 1, 1], [], []>} : vector<8x32xf32>, vector<32x128xf32>, vector<8x128xf32> -> vector<8x128xf32>
    %320 = vector.extract_strided_slice %299 {offsets = [0, 128], sizes = [8, 128], strides = [1, 1]} : vector<8x256xf32> to vector<8x128xf32>
    %321 = arith.addf %319, %320 : vector<8x128xf32>
    %322 = arith.addf %321, %7 : vector<8x128xf32>
    %323 = arith.negf %322 : vector<8x128xf32>
    %324 = math.exp %323 : vector<8x128xf32>
    %cst_44 = arith.constant 1.000000e+00 : f32
    %325 = vector.broadcast %cst_44 : f32 to vector<8x128xf32>
    %326 = arith.addf %325, %324 : vector<8x128xf32>
    %327 = arith.divf %325, %326 : vector<8x128xf32>
    %328 = math.tanh %322 : vector<8x128xf32>
    %329 = vector.extract_strided_slice %327 {offsets = [0, 0], sizes = [8, 32], strides = [1, 1]} : vector<8x128xf32> to vector<8x32xf32>
    %330 = vector.extract_strided_slice %327 {offsets = [0, 32], sizes = [8, 32], strides = [1, 1]} : vector<8x128xf32> to vector<8x32xf32>
    %331 = vector.extract_strided_slice %328 {offsets = [0, 64], sizes = [8, 32], strides = [1, 1]} : vector<8x128xf32> to vector<8x32xf32>
    %332 = vector.extract_strided_slice %327 {offsets = [0, 96], sizes = [8, 32], strides = [1, 1]} : vector<8x128xf32> to vector<8x32xf32>
    %333 = arith.mulf %330, %295 : vector<8x32xf32>
    %334 = arith.mulf %329, %331 : vector<8x32xf32>
    %335 = arith.addf %333, %334 : vector<8x32xf32>
    %336 = math.tanh %335 : vector<8x32xf32>
    %337 = arith.mulf %332, %336 : vector<8x32xf32>
    %c0_45 = arith.constant 0 : index
    %c0_46 = arith.constant 0 : index
    %338 = vector.load %arg6[%c0_45, %c0_46] : memref<32x1xf32, #tpu.memory_space<vmem>>, vector<32x1xf32>
    %cst_47 = arith.constant dense<0.000000e+00> : vector<8x1xf32>
    %339 = tpu.matmul %337, %338, %cst_47 {dimension_numbers = #tpu.dot_dimension_numbers<[1], [0], [0], [1], [0, 0, 1, 1], [], []>} : vector<8x32xf32>, vector<32x1xf32>, vector<8x1xf32> -> vector<8x1xf32>
    %c0_48 = arith.constant 0 : index
    %c0_49 = arith.constant 0 : index
    %340 = vector.load %arg7[%c0_48, %c0_49] : memref<1x1xf32, #tpu.memory_space<vmem>>, vector<1x1xf32>
    %341 = vector.broadcast %340 : vector<1x1xf32> to vector<8x1xf32>
    %342 = arith.addf %339, %341 : vector<8x1xf32>
    %c0_50 = arith.constant 0 : index
    %c0_51 = arith.constant 0 : index
    %343 = vector.load %arg8[%c0_50, %c0_51] : memref<8x1xf32, #tpu.memory_space<vmem>>, vector<8x1xf32>
    tpu.vector_store %arg8[%c0_50, %c0_51], %342 {strides = array<i32>} : memref<8x1xf32, #tpu.memory_space<vmem>>, vector<8x1xf32>,
    return
  }
}

</mosaic_0001>

<llo_original>
// kernel: electricity_net_forward.1
$region0: #{electricity_net_forward.1}
  #allocation0 [shape = 'u32[]', space=smem, size = 0x4, offset = 0x4, fixed_abs, tag = 'smem constant byte address 0x4 - core index']
  #allocation1 [shape = 'u32[144,128]{1,0:T(1,128)}', space=vmem, size = 0x12000, scoped, tag = 'internal scratch']
  #allocation2 [shape = 'f32[1,1]{1,0:T(1,128)S(1)}', space=vmem, size = 0x200, scoped, tag = 'scoped memory for electricity_net_forward.1']
  %s0 = inlined_call_operand.vmem [shape: f32[8,8], index: 0, kind: input, shape index: {}]
  %s1 = inlined_call_operand.vmem [shape: f32[1,128], index: 1, kind: input, shape index: {}]
  %s2 = inlined_call_operand.vmem [shape: f32[1,128], index: 2, kind: input, shape index: {}]
  %s3 = inlined_call_operand.vmem [shape: f32[64,256], index: 3, kind: input, shape index: {}]
  %s4 = inlined_call_operand.vmem [shape: f32[32,128], index: 4, kind: input, shape index: {}]
  %s5 = inlined_call_operand.vmem [shape: f32[1,128], index: 5, kind: input, shape index: {}]
  %s6 = inlined_call_operand.vmem [shape: f32[32,1], index: 6, kind: input, shape index: {}]
  %s7 = inlined_call_operand.<no memory space> [shape: f32[1,1], index: 7, kind: input, shape index: {}]
  %s8 = inlined_call_operand.vmem [shape: f32[8,1], index: 8, kind: output, shape index: {}]
  %s9 = sld [smem:[#allocation0]]
  $region42: #{electricity_net_forward.1} parent=0
    _
  %s11 = ssub.s32 1, %s9
  %s12 = scalar_select 0, %s11, %s9
  %v13 = vstv %s7
  %14 = vst [vmem:[#allocation2] sm:$0x1] %v13
  // Predicated region
  $region2: #{electricity_net_forward.1} parent=0 // pred_check
    _
  $region3: #{electricity_net_forward.1} parent=0 // pred_check_branch
    %16 = sbr.rel (0) target = $region5
  $region4: #{electricity_net_forward.1} parent=0 // pred_region
    _
  $region5: #{electricity_net_forward.1} parent=0 // pred_fallthru
    _
  // Predicated region
  $region6: #{electricity_net_forward.1} parent=0 // pred_check
    _
  $region7: #{electricity_net_forward.1} parent=0 // pred_check_branch
    %18 = sbr.rel (0) target = $region9
  $region8: #{electricity_net_forward.1} parent=0 // pred_region
    _
  $region9: #{electricity_net_forward.1} parent=0 // pred_fallthru
    _
  // Predicated region
  $region10: #{electricity_net_forward.1} parent=0 // pred_check
    _
  $region11: #{electricity_net_forward.1} parent=0 // pred_check_branch
    %20 = sbr.rel (0) target = $region13
  $region12: #{electricity_net_forward.1} parent=0 // pred_region
    _
  $region13: #{electricity_net_forward.1} parent=0 // pred_fallthru
    _
  // Predicated region
  $region14: #{electricity_net_forward.1} parent=0 // pred_check
    _
  $region15: #{electricity_net_forward.1} parent=0 // pred_check_branch
    %22 = sbr.rel (0) target = $region17
  $region16: #{electricity_net_forward.1} parent=0 // pred_region
    _
  $region17: #{electricity_net_forward.1} parent=0 // pred_fallthru
    _
  // Predicated region
  $region18: #{electricity_net_forward.1} parent=0 // pred_check
    _
  $region19: #{electricity_net_forward.1} parent=0 // pred_check_branch
    %24 = sbr.rel (0) target = $region21
  $region20: #{electricity_net_forward.1} parent=0 // pred_region
    _
  $region21: #{electricity_net_forward.1} parent=0 // pred_fallthru
    _
  // Predicated region
  $region22: #{electricity_net_forward.1} parent=0 // pred_check
    _
  $region23: #{electricity_net_forward.1} parent=0 // pred_check_branch
    %26 = sbr.rel (0) target = $region25
  $region24: #{electricity_net_forward.1} parent=0 // pred_region
    _
  $region25: #{electricity_net_forward.1} parent=0 // pred_fallthru
    _
  // Predicated region
  $region26: #{electricity_net_forward.1} parent=0 // pred_check
    _
  $region27: #{electricity_net_forward.1} parent=0 // pred_check_branch
    %28 = sbr.rel (0) target = $region29
  $region28: #{electricity_net_forward.1} parent=0 // pred_region
    _
  $region29: #{electricity_net_forward.1} parent=0 // pred_fallthru
    _
  // Predicated region
  $region30: #{electricity_net_forward.1} parent=0 // pred_check
    _
  $region31: #{electricity_net_forward.1} parent=0 // pred_check_branch
    %30 = sbr.rel (0) target = $region33
  $region32: #{electricity_net_forward.1} parent=0 // pred_region
    _
  $region33: #{electricity_net_forward.1} parent=0 // pred_fallthru
    _
  %v31 = vld [vmem:[%s0] sm:$0xff]
  %v32 = vld [vmem:[%s1] sm:$0x1]
  %v33 = vld [vmem:[%s2] sm:$0x1]
  %v34 = vld [vmem:[%s3] sm:$0xff]
  %v35 = vld [vmem:[%s3 + $0x8] sm:$0xff]
  %v36 = vld [vmem:[%s3 + $0x10] sm:$0xff]
  %v37 = vld [vmem:[%s3 + $0x18] sm:$0xff]
  %v38 = vld [vmem:[%s3 + $0x20] sm:$0xff]
  %v39 = vld [vmem:[%s3 + $0x28] sm:$0xff]
  %v40 = vld [vmem:[%s3 + $0x30] sm:$0xff]
  %v41 = vld [vmem:[%s3 + $0x38] sm:$0xff]
  %v42 = vld [vmem:[%s3 + $0x40] sm:$0xff]
  %v43 = vld [vmem:[%s3 + $0x48] sm:$0xff]
  %v44 = vld [vmem:[%s3 + $0x50] sm:$0xff]
  %v45 = vld [vmem:[%s3 + $0x58] sm:$0xff]
  %v46 = vld [vmem:[%s3 + $0x60] sm:$0xff]
  %v47 = vld [vmem:[%s3 + $0x68] sm:$0xff]
  %v48 = vld [vmem:[%s3 + $0x70] sm:$0xff]
  %v49 = vld [vmem:[%s3 + $0x78] sm:$0xff]
  %v50 = vld [vmem:[%s4] sm:$0xff]
  %v51 = vld [vmem:[%s4 + $0x8] sm:$0xff]
  %v52 = vld [vmem:[%s4 + $0x10] sm:$0xff]
  %v53 = vld [vmem:[%s4 + $0x18] sm:$0xff]
  %v54 = vld [vmem:[%s5] sm:$0x1]
  %v56 = vlaneseq
  %v57 = vshrl.u32 %v56, 7
  %v58 = vsub.s32 0, %v57
  %v59 = vrot.slane %v54, %v58
  %v61 = vlaneseq
  %v62 = vshrl.u32 %v61, 7
  %v63 = vsub.s32 0, %v62
  %v64 = vrot.slane %v31, %v63
  %66 = vbcast.lane.b32.xlu0 %v64, 256
  %v67 = vpop.permute.xlu0 %66
  %v68 = vlaneseq
  %v69 = vshrl.u32 %v68, 7
  %v70 = vsub.s32 1, %v69
  %v71 = vrot.slane %v31, %v70
  %73 = vbcast.lane.b32.xlu0 %v71, 256
  %v74 = vpop.permute.xlu0 %73
  %v75 = vlaneseq
  %v76 = vshrl.u32 %v75, 7
  %v77 = vsub.s32 2, %v76
  %v78 = vrot.slane %v31, %v77
  %80 = vbcast.lane.b32.xlu0 %v78, 256
  %v81 = vpop.permute.xlu0 %80
  %v82 = vlaneseq
  %v83 = vshrl.u32 %v82, 7
  %v84 = vsub.s32 3, %v83
  %v85 = vrot.slane %v31, %v84
  %87 = vbcast.lane.b32.xlu0 %v85, 256
  %v88 = vpop.permute.xlu0 %87
  %v89 = vlaneseq
  %v90 = vshrl.u32 %v89, 7
  %v91 = vsub.s32 4, %v90
  %v92 = vrot.slane %v31, %v91
  %94 = vbcast.lane.b32.xlu0 %v92, 256
  %v95 = vpop.permute.xlu0 %94
  %v96 = vlaneseq
  %v97 = vshrl.u32 %v96, 7
  %v98 = vsub.s32 5, %v97
  %v99 = vrot.slane %v31, %v98
  %101 = vbcast.lane.b32.xlu0 %v99, 256
  %v102 = vpop.permute.xlu0 %101
  %v103 = vlaneseq
  %v104 = vshrl.u32 %v103, 7
  %v105 = vsub.s32 6, %v104
  %v106 = vrot.slane %v31, %v105
  %108 = vbcast.lane.b32.xlu0 %v106, 256
  %v109 = vpop.permute.xlu0 %108
  %v110 = vlaneseq
  %v111 = vshrl.u32 %v110, 7
  %v112 = vsub.s32 7, %v111
  %v113 = vrot.slane %v31, %v112
  %115 = vbcast.lane.b32.xlu0 %v113, 256
  %v116 = vpop.permute.xlu0 %115
  %v118 = vlaneseq
  %v119 = vshrl.u32 %v118, 7
  %v120 = vsub.s32 0, %v119
  %v121 = vrot.slane %v32, %v120
  %v123 = vmul.f32 %v67, %v121
  %v124 = vmul.f32 %v74, %v121
  %v125 = vmul.f32 %v81, %v121
  %v126 = vmul.f32 %v88, %v121
  %v127 = vmul.f32 %v95, %v121
  %v128 = vmul.f32 %v102, %v121
  %v129 = vmul.f32 %v109, %v121
  %v130 = vmul.f32 %v116, %v121
  %v132 = vlaneseq
  %v133 = vshrl.u32 %v132, 7
  %v134 = vsub.s32 0, %v133
  %v135 = vrot.slane %v33, %v134
  %v137 = vadd.f32 %v123, %v135
  %v138 = vadd.f32 %v124, %v135
  %v139 = vadd.f32 %v125, %v135
  %v140 = vadd.f32 %v126, %v135
  %v141 = vadd.f32 %v127, %v135
  %v142 = vadd.f32 %v128, %v135
  %v143 = vadd.f32 %v129, %v135
  %v144 = vadd.f32 %v130, %v135
  %vm145 = vcmask 523264
  %v147 = vsel %vm145, 0.0, 0
  %149 = vmatprep.subr.mxu0 0.0
  %150 = vmatpush1.msra.mxu0 0.0
  %151 = vmatprep.subr.mxu0 0.0
  %152 = vmatpush1.msra.mxu0 0.0
  %153 = vmatprep.subr.mxu0 0.0
  %154 = vmatpush1.msra.mxu0 0.0
  %155 = vmatprep.subr.mxu0 0.0
  %156 = vmatpush1.msra.mxu0 0.0
  %157 = vmatprep.subr.mxu0 0.0
  %158 = vmatpush1.msra.mxu0 0.0
  %159 = vmatprep.subr.mxu0 0.0
  %160 = vmatpush1.msra.mxu0 0.0
  %161 = vmatprep.subr.mxu0 0.0
  %162 = vmatpush1.msra.mxu0 0.0
  %163 = vmatprep.subr.mxu0 0.0
  %164 = vmatpush1.msra.mxu0 0.0
  %165 = vmatprep.subr.mxu0 %v49
  %166 = vmatpush1.msra.mxu0 %v48
  %167 = vmatprep.subr.mxu0 %v47
  %168 = vmatpush1.msra.mxu0 %v46
  %169 = vmatprep.subr.mxu0 %v45
  %170 = vmatpush1.msra.mxu0 %v44
  %171 = vmatprep.subr.mxu0 %v43
  %172 = vmatpush1.msra.mxu0 %v42
  %173 = vmatprep.subr.mxu0 %v41
  %174 = vmatpush1.msra.mxu0 %v40
  %175 = vmatprep.subr.mxu0 %v39
  %176 = vmatpush1.msra.mxu0 %v38
  %177 = vmatprep.subr.mxu0 %v37
  %178 = vmatpush1.msra.mxu0 %v36
  %179 = vmatprep.subr.mxu0 %v35
  %180 = vmatpush1.msra.mxu0 %v34
  %181 = vmatprep.subr.mxu0 0.0
  %182 = vmatpush2.msra.mxu0 0.0
  %183 = vmatprep.subr.mxu0 0.0
  %184 = vmatpush2.msra.mxu0 0.0
  %185 = vmatprep.subr.mxu0 0.0
  %186 = vmatpush2.msra.mxu0 0.0
  %187 = vmatprep.subr.mxu0 0.0
  %188 = vmatpush2.msra.mxu0 0.0
  %189 = vmatprep.subr.mxu0 0.0
  %190 = vmatpush2.msra.mxu0 0.0
  %191 = vmatprep.subr.mxu0 0.0
  %192 = vmatpush2.msra.mxu0 0.0
  %193 = vmatprep.subr.mxu0 0.0
  %194 = vmatpush2.msra.mxu0 0.0
  %195 = vmatprep.subr.mxu0 0.0
  %196 = vmatpush2.msra.mxu0 0.0
  %197 = vmatprep.subr.mxu0 0.0
  %198 = vmatpush2.msra.mxu0 0.0
  %199 = vmatprep.subr.mxu0 0.0
  %200 = vmatpush2.msra.mxu0 0.0
  %201 = vmatprep.subr.mxu0 0.0
  %202 = vmatpush2.msra.mxu0 0.0
  %203 = vmatprep.subr.mxu0 0.0
  %204 = vmatpush2.msra.mxu0 0.0
  %205 = vmatprep.subr.mxu0 0.0
  %206 = vmatpush2.msra.mxu0 0.0
  %207 = vmatprep.subr.mxu0 0.0
  %208 = vmatpush2.msra.mxu0 0.0
  %209 = vmatprep.subr.mxu0 0.0
  %210 = vmatpush2.msra.mxu0 0.0
  %211 = vmatprep.subr.mxu0 0.0
  %212 = vmatpush2.msra.mxu0 0.0
  %213 = vmatprep.mubr.f32.mxu0 0.0
  %214 = vmatmul.mubr.f32.gmra.mxu0 %v147
  %v215 = vpop.f32.mrf.mxu0
  %v216 = vadd.f32 0.0, %v215
  %v217 = vpop.f32.mrf.mxu0
  %v218 = vadd.f32 0.0, %v217
  %219 = vdwg.mxu0
  %v220 = vadd.f32 %v137, %v216
  %v221 = vxor.u32 %v220, 2147483648
  %v222 = vmul.f32 %v221, 1.442695
  %v223 = vpow.pop %v222
  %v224 = vadd.f32 %v223, 1.0
  %v225 = vrcp.pop %v224
  %v226 = vmul.f32 1.0, %v225
  %v227 = vtanh.pop %v220
  %v228 = vmul.f32 %v226, 0.0
  %230 = vrot.lane.b32.xlu0 %v227, 64
  %v231 = vpop.permute.xlu0 %230
  %v233 = vmul.f32 %v226, %v231
  %235 = vrot.lane.b32.xlu0 %v233, 32
  %v236 = vpop.permute.xlu0 %235
  %v238 = vadd.f32 %v228, %v236
  %v239 = vtanh.pop %v238
  %241 = vrot.lane.b32.xlu0 %v239, 64
  %v242 = vpop.permute.xlu0 %241
  %v244 = vmul.f32 %v226, %v242
  %246 = vrot.lane.b32.xlu0 %v244, 32
  %v247 = vpop.permute.xlu0 %246
  %vm248 = vcmask 261120
  %v249 = vsel %vm248, %v247, 0
  %251 = vmatprep.subr.mxu0 0.0
  %252 = vmatpush1.msra.mxu0 0.0
  %253 = vmatprep.subr.mxu0 0.0
  %254 = vmatpush1.msra.mxu0 0.0
  %255 = vmatprep.subr.mxu0 0.0
  %256 = vmatpush1.msra.mxu0 0.0
  %257 = vmatprep.subr.mxu0 0.0
  %258 = vmatpush1.msra.mxu0 0.0
  %259 = vmatprep.subr.mxu0 0.0
  %260 = vmatpush1.msra.mxu0 0.0
  %261 = vmatprep.subr.mxu0 0.0
  %262 = vmatpush1.msra.mxu0 0.0
  %263 = vmatprep.subr.mxu0 0.0
  %264 = vmatpush1.msra.mxu0 0.0
  %265 = vmatprep.subr.mxu0 0.0
  %266 = vmatpush1.msra.mxu0 0.0
  %267 = vmatprep.subr.mxu0 0.0
  %268 = vmatpush1.msra.mxu0 0.0
  %269 = vmatprep.subr.mxu0 0.0
  %270 = vmatpush1.msra.mxu0 0.0
  %271 = vmatprep.subr.mxu0 0.0
  %272 = vmatpush1.msra.mxu0 0.0
  %273 = vmatprep.subr.mxu0 0.0
  %274 = vmatpush1.msra.mxu0 0.0
  %275 = vmatprep.subr.mxu0 0.0
  %276 = vmatpush1.msra.mxu0 %v53
  %277 = vmatprep.subr.mxu0 0.0
  %278 = vmatpush1.msra.mxu0 %v52
  %279 = vmatprep.subr.mxu0 0.0
  %280 = vmatpush1.msra.mxu0 %v51
  %281 = vmatprep.subr.mxu0 0.0
  %282 = vmatpush1.msra.mxu0 %v50
  %283 = vmatprep.subr.mxu0 0.0
  %284 = vmatpush2.msra.mxu0 0.0
  %285 = vmatprep.subr.mxu0 0.0
  %286 = vmatpush2.msra.mxu0 0.0
  %287 = vmatprep.subr.mxu0 0.0
  %288 = vmatpush2.msra.mxu0 0.0
  %289 = vmatprep.subr.mxu0 0.0
  %290 = vmatpush2.msra.mxu0 0.0
  %291 = vmatprep.subr.mxu0 0.0
  %292 = vmatpush2.msra.mxu0 0.0
  %293 = vmatprep.subr.mxu0 0.0
  %294 = vmatpush2.msra.mxu0 0.0
  %295 = vmatprep.subr.mxu0 0.0
  %296 = vmatpush2.msra.mxu0 0.0
  %297 = vmatprep.subr.mxu0 0.0
  %298 = vmatpush2.msra.mxu0 0.0
  %299 = vmatprep.subr.mxu0 0.0
  %300 = vmatpush2.msra.mxu0 0.0
  %301 = vmatprep.subr.mxu0 0.0
  %302 = vmatpush2.msra.mxu0 0.0
  %303 = vmatprep.subr.mxu0 0.0
  %304 = vmatpush2.msra.mxu0 0.0
  %305 = vmatprep.subr.mxu0 0.0
  %306 = vmatpush2.msra.mxu0 0.0
  %307 = vmatprep.subr.mxu0 0.0
  %308 = vmatpush2.msra.mxu0 0.0
  %309 = vmatprep.subr.mxu0 0.0
  %310 = vmatpush2.msra.mxu0 0.0
  %311 = vmatprep.subr.mxu0 0.0
  %312 = vmatpush2.msra.mxu0 0.0
  %313 = vmatprep.subr.mxu0 0.0
  %314 = vmatpush2.msra.mxu0 0.0
  %315 = vmatprep.mubr.f32.mxu0 0.0
  %316 = vmatmul.mubr.f32.gmra.mxu0 %v249
  %v317 = vpop.f32.mrf.mxu0
  %v318 = vadd.f32 %v218, %v317
  %v319 = vpop.f32.mrf.mxu0
  %320 = vdwg.mxu0
  %v321 = vadd.f32 %v318, %v59
  %v322 = vxor.u32 %v321, 2147483648
  %v323 = vmul.f32 %v322, 1.442695
  %v324 = vpow.pop %v323
  %v325 = vadd.f32 %v324, 1.0
  %v326 = vrcp.pop %v325
  %v327 = vmul.f32 1.0, %v326
  %v328 = vtanh.pop %v321
  %v329 = vmul.f32 %v327, 0.0
  %331 = vrot.lane.b32.xlu0 %v328, 64
  %v332 = vpop.permute.xlu0 %331
  %v334 = vmul.f32 %v327, %v332
  %336 = vrot.lane.b32.xlu0 %v334, 32
  %v337 = vpop.permute.xlu0 %336
  %v339 = vadd.f32 %v329, %v337
  %v340 = vtanh.pop %v339
  %342 = vrot.lane.b32.xlu0 %v340, 64
  %v343 = vpop.permute.xlu0 %342
  %v345 = vmul.f32 %v327, %v343
  %348 = vrot.lane.b32.xlu0 %v345, 64
  %v349 = vpop.permute.xlu0 %348
  %v351 = vsel %vm248, %v247, %v349
  %v353 = vsel %vm145, %v351, 0
  %355 = vmatprep.subr.mxu0 0.0
  %356 = vmatpush1.msra.mxu0 0.0
  %357 = vmatprep.subr.mxu0 0.0
  %358 = vmatpush1.msra.mxu0 0.0
  %359 = vmatprep.subr.mxu0 0.0
  %360 = vmatpush1.msra.mxu0 0.0
  %361 = vmatprep.subr.mxu0 0.0
  %362 = vmatpush1.msra.mxu0 0.0
  %363 = vmatprep.subr.mxu0 0.0
  %364 = vmatpush1.msra.mxu0 0.0
  %365 = vmatprep.subr.mxu0 0.0
  %366 = vmatpush1.msra.mxu0 0.0
  %367 = vmatprep.subr.mxu0 0.0
  %368 = vmatpush1.msra.mxu0 0.0
  %369 = vmatprep.subr.mxu0 0.0
  %370 = vmatpush1.msra.mxu0 0.0
  %371 = vmatprep.subr.mxu0 %v49
  %372 = vmatpush1.msra.mxu0 %v48
  %373 = vmatprep.subr.mxu0 %v47
  %374 = vmatpush1.msra.mxu0 %v46
  %375 = vmatprep.subr.mxu0 %v45
  %376 = vmatpush1.msra.mxu0 %v44
  %377 = vmatprep.subr.mxu0 %v43
  %378 = vmatpush1.msra.mxu0 %v42
  %379 = vmatprep.subr.mxu0 %v41
  %380 = vmatpush1.msra.mxu0 %v40
  %381 = vmatprep.subr.mxu0 %v39
  %382 = vmatpush1.msra.mxu0 %v38
  %383 = vmatprep.subr.mxu0 %v37
  %384 = vmatpush1.msra.mxu0 %v36
  %385 = vmatprep.subr.mxu0 %v35
  %386 = vmatpush1.msra.mxu0 %v34
  %387 = vmatprep.subr.mxu0 0.0
  %388 = vmatpush2.msra.mxu0 0.0
  %389 = vmatprep.subr.mxu0 0.0
  %390 = vmatpush2.msra.mxu0 0.0
  %391 = vmatprep.subr.mxu0 0.0
  %392 = vmatpush2.msra.mxu0 0.0
  %393 = vmatprep.subr.mxu0 0.0
  %394 = vmatpush2.msra.mxu0 0.0
  %395 = vmatprep.subr.mxu0 0.0
  %396 = vmatpush2.msra.mxu0 0.0
  %397 = vmatprep.subr.mxu0 0.0
  %398 = vmatpush2.msra.mxu0 0.0
  %399 = vmatprep.subr.mxu0 0.0
  %400 = vmatpush2.msra.mxu0 0.0
  %401 = vmatprep.subr.mxu0 0.0
  %402 = vmatpush2.msra.mxu0 0.0
  %403 = vmatprep.subr.mxu0 0.0
  %404 = vmatpush2.msra.mxu0 0.0
  %405 = vmatprep.subr.mxu0 0.0
  %406 = vmatpush2.msra.mxu0 0.0
  %407 = vmatprep.subr.mxu0 0.0
  %408 = vmatpush2.msra.mxu0 0.0
  %409 = vmatprep.subr.mxu0 0.0
  %410 = vmatpush2.msra.mxu0 0.0
  %411 = vmatprep.subr.mxu0 0.0
  %412 = vmatpush2.msra.mxu0 0.0
  %413 = vmatprep.subr.mxu0 0.0
  %414 = vmatpush2.msra.mxu0 0.0
  %415 = vmatprep.subr.mxu0 0.0
  %416 = vmatpush2.msra.mxu0 0.0
  %417 = vmatprep.subr.mxu0 0.0
  %418 = vmatpush2.msra.mxu0 0.0
  %419 = vmatprep.mubr.f32.mxu0 0.0
  %420 = vmatmul.mubr.f32.gmra.mxu0 %v353
  %v421 = vpop.f32.mrf.mxu0
  %v422 = vadd.f32 0.0, %v421
  %v423 = vpop.f32.mrf.mxu0
  %v424 = vadd.f32 0.0, %v423
  %425 = vdwg.mxu0
  %v426 = vadd.f32 %v138, %v422
  %v427 = vxor.u32 %v426, 2147483648
  %v428 = vmul.f32 %v427, 1.442695
  %v429 = vpow.pop %v428
  %v430 = vadd.f32 %v429, 1.0
  %v431 = vrcp.pop %v430
  %v432 = vmul.f32 1.0, %v431
  %v433 = vtanh.pop %v426
  %v434 = vmul.f32 %v432, %v238
  %436 = vrot.lane.b32.xlu0 %v433, 64
  %v437 = vpop.permute.xlu0 %436
  %v439 = vmul.f32 %v432, %v437
  %441 = vrot.lane.b32.xlu0 %v439, 32
  %v442 = vpop.permute.xlu0 %441
  %v444 = vadd.f32 %v434, %v442
  %v445 = vtanh.pop %v444
  %447 = vrot.lane.b32.xlu0 %v445, 64
  %v448 = vpop.permute.xlu0 %447
  %v450 = vmul.f32 %v432, %v448
  %452 = vrot.lane.b32.xlu0 %v450, 32
  %v453 = vpop.permute.xlu0 %452
  %v454 = vsel %vm248, %v453, 0
  %456 = vmatprep.subr.mxu0 0.0
  %457 = vmatpush1.msra.mxu0 0.0
  %458 = vmatprep.subr.mxu0 0.0
  %459 = vmatpush1.msra.mxu0 0.0
  %460 = vmatprep.subr.mxu0 0.0
  %461 = vmatpush1.msra.mxu0 0.0
  %462 = vmatprep.subr.mxu0 0.0
  %463 = vmatpush1.msra.mxu0 0.0
  %464 = vmatprep.subr.mxu0 0.0
  %465 = vmatpush1.msra.mxu0 0.0
  %466 = vmatprep.subr.mxu0 0.0
  %467 = vmatpush1.msra.mxu0 0.0
  %468 = vmatprep.subr.mxu0 0.0
  %469 = vmatpush1.msra.mxu0 0.0
  %470 = vmatprep.subr.mxu0 0.0
  %471 = vmatpush1.msra.mxu0 0.0
  %472 = vmatprep.subr.mxu0 0.0
  %473 = vmatpush1.msra.mxu0 0.0
  %474 = vmatprep.subr.mxu0 0.0
  %475 = vmatpush1.msra.mxu0 0.0
  %476 = vmatprep.subr.mxu0 0.0
  %477 = vmatpush1.msra.mxu0 0.0
  %478 = vmatprep.subr.mxu0 0.0
  %479 = vmatpush1.msra.mxu0 0.0
  %480 = vmatprep.subr.mxu0 0.0
  %481 = vmatpush1.msra.mxu0 %v53
  %482 = vmatprep.subr.mxu0 0.0
  %483 = vmatpush1.msra.mxu0 %v52
  %484 = vmatprep.subr.mxu0 0.0
  %485 = vmatpush1.msra.mxu0 %v51
  %486 = vmatprep.subr.mxu0 0.0
  %487 = vmatpush1.msra.mxu0 %v50
  %488 = vmatprep.subr.mxu0 0.0
  %489 = vmatpush2.msra.mxu0 0.0
  %490 = vmatprep.subr.mxu0 0.0
  %491 = vmatpush2.msra.mxu0 0.0
  %492 = vmatprep.subr.mxu0 0.0
  %493 = vmatpush2.msra.mxu0 0.0
  %494 = vmatprep.subr.mxu0 0.0
  %495 = vmatpush2.msra.mxu0 0.0
  %496 = vmatprep.subr.mxu0 0.0
  %497 = vmatpush2.msra.mxu0 0.0
  %498 = vmatprep.subr.mxu0 0.0
  %499 = vmatpush2.msra.mxu0 0.0
  %500 = vmatprep.subr.mxu0 0.0
  %501 = vmatpush2.msra.mxu0 0.0
  %502 = vmatprep.subr.mxu0 0.0
  %503 = vmatpush2.msra.mxu0 0.0
  %504 = vmatprep.subr.mxu0 0.0
  %505 = vmatpush2.msra.mxu0 0.0
  %506 = vmatprep.subr.mxu0 0.0
  %507 = vmatpush2.msra.mxu0 0.0
  %508 = vmatprep.subr.mxu0 0.0
  %509 = vmatpush2.msra.mxu0 0.0
  %510 = vmatprep.subr.mxu0 0.0
  %511 = vmatpush2.msra.mxu0 0.0
  %512 = vmatprep.subr.mxu0 0.0
  %513 = vmatpush2.msra.mxu0 0.0
  %514 = vmatprep.subr.mxu0 0.0
  %515 = vmatpush2.msra.mxu0 0.0
  %516 = vmatprep.subr.mxu0 0.0
  %517 = vmatpush2.msra.mxu0 0.0
  %518 = vmatprep.subr.mxu0 0.0
  %519 = vmatpush2.msra.mxu0 0.0
  %520 = vmatprep.mubr.f32.mxu0 0.0
  %521 = vmatmul.mubr.f32.gmra.mxu0 %v454
  %v522 = vpop.f32.mrf.mxu0
  %v523 = vadd.f32 %v424, %v522
  %v524 = vpop.f32.mrf.mxu0
  %525 = vdwg.mxu0
  %v526 = vadd.f32 %v523, %v59
  %v527 = vxor.u32 %v526, 2147483648
  %v528 = vmul.f32 %v527, 1.442695
  %v529 = vpow.pop %v528
  %v530 = vadd.f32 %v529, 1.0
  %v531 = vrcp.pop %v530
  %v532 = vmul.f32 1.0, %v531
  %v533 = vtanh.pop %v526
  %v534 = vmul.f32 %v532, %v339
  %536 = vrot.lane.b32.xlu0 %v533, 64
  %v537 = vpop.permute.xlu0 %536
  %v539 = vmul.f32 %v532, %v537
  %541 = vrot.lane.b32.xlu0 %v539, 32
  %v542 = vpop.permute.xlu0 %541
  %v544 = vadd.f32 %v534, %v542
  %v545 = vtanh.pop %v544
  %547 = vrot.lane.b32.xlu0 %v545, 64
  %v548 = vpop.permute.xlu0 %547
  %v550 = vmul.f32 %v532, %v548
  %553 = vrot.lane.b32.xlu0 %v550, 64
  %v554 = vpop.permute.xlu0 %553
  %v556 = vsel %vm248, %v453, %v554
  %v558 = vsel %vm145, %v556, 0
  %560 = vmatprep.subr.mxu0 0.0
  %561 = vmatpush1.msra.mxu0 0.0
  %562 = vmatprep.subr.mxu0 0.0
  %563 = vmatpush1.msra.mxu0 0.0
  %564 = vmatprep.subr.mxu0 0.0
  %565 = vmatpush1.msra.mxu0 0.0
  %566 = vmatprep.subr.mxu0 0.0
  %567 = vmatpush1.msra.mxu0 0.0
  %568 = vmatprep.subr.mxu0 0.0
  %569 = vmatpush1.msra.mxu0 0.0
  %570 = vmatprep.subr.mxu0 0.0
  %571 = vmatpush1.msra.mxu0 0.0
  %572 = vmatprep.subr.mxu0 0.0
  %573 = vmatpush1.msra.mxu0 0.0
  %574 = vmatprep.subr.mxu0 0.0
  %575 = vmatpush1.msra.mxu0 0.0
  %576 = vmatprep.subr.mxu0 %v49
  %577 = vmatpush1.msra.mxu0 %v48
  %578 = vmatprep.subr.mxu0 %v47
  %579 = vmatpush1.msra.mxu0 %v46
  %580 = vmatprep.subr.mxu0 %v45
  %581 = vmatpush1.msra.mxu0 %v44
  %582 = vmatprep.subr.mxu0 %v43
  %583 = vmatpush1.msra.mxu0 %v42
  %584 = vmatprep.subr.mxu0 %v41
  %585 = vmatpush1.msra.mxu0 %v40
  %586 = vmatprep.subr.mxu0 %v39
  %587 = vmatpush1.msra.mxu0 %v38
  %588 = vmatprep.subr.mxu0 %v37
  %589 = vmatpush1.msra.mxu0 %v36
  %590 = vmatprep.subr.mxu0 %v35
  %591 = vmatpush1.msra.mxu0 %v34
  %592 = vmatprep.subr.mxu0 0.0
  %593 = vmatpush2.msra.mxu0 0.0
  %594 = vmatprep.subr.mxu0 0.0
  %595 = vmatpush2.msra.mxu0 0.0
  %596 = vmatprep.subr.mxu0 0.0
  %597 = vmatpush2.msra.mxu0 0.0
  %598 = vmatprep.subr.mxu0 0.0
  %599 = vmatpush2.msra.mxu0 0.0
  %600 = vmatprep.subr.mxu0 0.0
  %601 = vmatpush2.msra.mxu0 0.0
  %602 = vmatprep.subr.mxu0 0.0
  %603 = vmatpush2.msra.mxu0 0.0
  %604 = vmatprep.subr.mxu0 0.0
  %605 = vmatpush2.msra.mxu0 0.0
  %606 = vmatprep.subr.mxu0 0.0
  %607 = vmatpush2.msra.mxu0 0.0
  %608 = vmatprep.subr.mxu0 0.0
  %609 = vmatpush2.msra.mxu0 0.0
  %610 = vmatprep.subr.mxu0 0.0
  %611 = vmatpush2.msra.mxu0 0.0
  %612 = vmatprep.subr.mxu0 0.0
  %613 = vmatpush2.msra.mxu0 0.0
  %614 = vmatprep.subr.mxu0 0.0
  %615 = vmatpush2.msra.mxu0 0.0
  %616 = vmatprep.subr.mxu0 0.0
  %617 = vmatpush2.msra.mxu0 0.0
  %618 = vmatprep.subr.mxu0 0.0
  %619 = vmatpush2.msra.mxu0 0.0
  %620 = vmatprep.subr.mxu0 0.0
  %621 = vmatpush2.msra.mxu0 0.0
  %622 = vmatprep.subr.mxu0 0.0
  %623 = vmatpush2.msra.mxu0 0.0
  %624 = vmatprep.mubr.f32.mxu0 0.0
  %625 = vmatmul.mubr.f32.gmra.mxu0 %v558
  %v626 = vpop.f32.mrf.mxu0
  %v627 = vadd.f32 0.0, %v626
  %v628 = vpop.f32.mrf.mxu0
  %v629 = vadd.f32 0.0, %v628
  %630 = vdwg.mxu0
  %v631 = vadd.f32 %v139, %v627
  %v632 = vxor.u32 %v631, 2147483648
  %v633 = vmul.f32 %v632, 1.442695
  %v634 = vpow.pop %v633
  %v635 = vadd.f32 %v634, 1.0
  %v636 = vrcp.pop %v635
  %v637 = vmul.f32 1.0, %v636
  %v638 = vtanh.pop %v631
  %v639 = vmul.f32 %v637, %v444
  %641 = vrot.lane.b32.xlu0 %v638, 64
  %v642 = vpop.permute.xlu0 %641
  %v644 = vmul.f32 %v637, %v642
  %646 = vrot.lane.b32.xlu0 %v644, 32
  %v647 = vpop.permute.xlu0 %646
  %v649 = vadd.f32 %v639, %v647
  %v650 = vtanh.pop %v649
  %652 = vrot.lane.b32.xlu0 %v650, 64
  %v653 = vpop.permute.xlu0 %652
  %v655 = vmul.f32 %v637, %v653
  %657 = vrot.lane.b32.xlu0 %v655, 32
  %v658 = vpop.permute.xlu0 %657
  %v659 = vsel %vm248, %v658, 0
  %661 = vmatprep.subr.mxu0 0.0
  %662 = vmatpush1.msra.mxu0 0.0
  %663 = vmatprep.subr.mxu0 0.0
  %664 = vmatpush1.msra.mxu0 0.0
  %665 = vmatprep.subr.mxu0 0.0
  %666 = vmatpush1.msra.mxu0 0.0
  %667 = vmatprep.subr.mxu0 0.0
  %668 = vmatpush1.msra.mxu0 0.0
  %669 = vmatprep.subr.mxu0 0.0
  %670 = vmatpush1.msra.mxu0 0.0
  %671 = vmatprep.subr.mxu0 0.0
  %672 = vmatpush1.msra.mxu0 0.0
  %673 = vmatprep.subr.mxu0 0.0
  %674 = vmatpush1.msra.mxu0 0.0
  %675 = vmatprep.subr.mxu0 0.0
  %676 = vmatpush1.msra.mxu0 0.0
  %677 = vmatprep.subr.mxu0 0.0
  %678 = vmatpush1.msra.mxu0 0.0
  %679 = vmatprep.subr.mxu0 0.0
  %680 = vmatpush1.msra.mxu0 0.0
  %681 = vmatprep.subr.mxu0 0.0
  %682 = vmatpush1.msra.mxu0 0.0
  %683 = vmatprep.subr.mxu0 0.0
  %684 = vmatpush1.msra.mxu0 0.0
  %685 = vmatprep.subr.mxu0 0.0
  %686 = vmatpush1.msra.mxu0 %v53
  %687 = vmatprep.subr.mxu0 0.0
  %688 = vmatpush1.msra.mxu0 %v52
  %689 = vmatprep.subr.mxu0 0.0
  %690 = vmatpush1.msra.mxu0 %v51
  %691 = vmatprep.subr.mxu0 0.0
  %692 = vmatpush1.msra.mxu0 %v50
  %693 = vmatprep.subr.mxu0 0.0
  %694 = vmatpush2.msra.mxu0 0.0
  %695 = vmatprep.subr.mxu0 0.0
  %696 = vmatpush2.msra.mxu0 0.0
  %697 = vmatprep.subr.mxu0 0.0
  %698 = vmatpush2.msra.mxu0 0.0
  %699 = vmatprep.subr.mxu0 0.0
  %700 = vmatpush2.msra.mxu0 0.0
  %701 = vmatprep.subr.mxu0 0.0
  %702 = vmatpush2.msra.mxu0 0.0
  %703 = vmatprep.subr.mxu0 0.0
  %704 = vmatpush2.msra.mxu0 0.0
  %705 = vmatprep.subr.mxu0 0.0
  %706 = vmatpush2.msra.mxu0 0.0
  %707 = vmatprep.subr.mxu0 0.0
  %708 = vmatpush2.msra.mxu0 0.0
  %709 = vmatprep.subr.mxu0 0.0
  %710 = vmatpush2.msra.mxu0 0.0
  %711 = vmatprep.subr.mxu0 0.0
  %712 = vmatpush2.msra.mxu0 0.0
  %713 = vmatprep.subr.mxu0 0.0
  %714 = vmatpush2.msra.mxu0 0.0
  %715 = vmatprep.subr.mxu0 0.0
  %716 = vmatpush2.msra.mxu0 0.0
  %717 = vmatprep.subr.mxu0 0.0
  %718 = vmatpush2.msra.mxu0 0.0
  %719 = vmatprep.subr.mxu0 0.0
  %720 = vmatpush2.msra.mxu0 0.0
  %721 = vmatprep.subr.mxu0 0.0
  %722 = vmatpush2.msra.mxu0 0.0
  %723 = vmatprep.subr.mxu0 0.0
  %724 = vmatpush2.msra.mxu0 0.0
  %725 = vmatprep.mubr.f32.mxu0 0.0
  %726 = vmatmul.mubr.f32.gmra.mxu0 %v659
  %v727 = vpop.f32.mrf.mxu0
  %v728 = vadd.f32 %v629, %v727
  %v729 = vpop.f32.mrf.mxu0
  %730 = vdwg.mxu0
  %v731 = vadd.f32 %v728, %v59
  %v732 = vxor.u32 %v731, 2147483648
  %v733 = vmul.f32 %v732, 1.442695
  %v734 = vpow.pop %v733
  %v735 = vadd.f32 %v734, 1.0
  %v736 = vrcp.pop %v735
  %v737 = vmul.f32 1.0, %v736
  %v738 = vtanh.pop %v731
  %v739 = vmul.f32 %v737, %v544
  %741 = vrot.lane.b32.xlu0 %v738, 64
  %v742 = vpop.permute.xlu0 %741
  %v744 = vmul.f32 %v737, %v742
  %746 = vrot.lane.b32.xlu0 %v744, 32
  %v747 = vpop.permute.xlu0 %746
  %v749 = vadd.f32 %v739, %v747
  %v750 = vtanh.pop %v749
  %752 = vrot.lane.b32.xlu0 %v750, 64
  %v753 = vpop.permute.xlu0 %752
  %v755 = vmul.f32 %v737, %v753
  %758 = vrot.lane.b32.xlu0 %v755, 64
  %v759 = vpop.permute.xlu0 %758
  %v761 = vsel %vm248, %v658, %v759
  %v763 = vsel %vm145, %v761, 0
  %765 = vmatprep.subr.mxu0 0.0
  %766 = vmatpush1.msra.mxu0 0.0
  %767 = vmatprep.subr.mxu0 0.0
  %768 = vmatpush1.msra.mxu0 0.0
  %769 = vmatprep.subr.mxu0 0.0
  %770 = vmatpush1.msra.mxu0 0.0
  %771 = vmatprep.subr.mxu0 0.0
  %772 = vmatpush1.msra.mxu0 0.0
  %773 = vmatprep.subr.mxu0 0.0
  %774 = vmatpush1.msra.mxu0 0.0
  %775 = vmatprep.subr.mxu0 0.0
  %776 = vmatpush1.msra.mxu0 0.0
  %777 = vmatprep.subr.mxu0 0.0
  %778 = vmatpush1.msra.mxu0 0.0
  %779 = vmatprep.subr.mxu0 0.0
  %780 = vmatpush1.msra.mxu0 0.0
  %781 = vmatprep.subr.mxu0 %v49
  %782 = vmatpush1.msra.mxu0 %v48
  %783 = vmatprep.subr.mxu0 %v47
  %784 = vmatpush1.msra.mxu0 %v46
  %785 = vmatprep.subr.mxu0 %v45
  %786 = vmatpush1.msra.mxu0 %v44
  %787 = vmatprep.subr.mxu0 %v43
  %788 = vmatpush1.msra.mxu0 %v42
  %789 = vmatprep.subr.mxu0 %v41
  %790 = vmatpush1.msra.mxu0 %v40
  %791 = vmatprep.subr.mxu0 %v39
  %792 = vmatpush1.msra.mxu0 %v38
  %793 = vmatprep.subr.mxu0 %v37
  %794 = vmatpush1.msra.mxu0 %v36
  %795 = vmatprep.subr.mxu0 %v35
  %796 = vmatpush1.msra.mxu0 %v34
  %797 = vmatprep.subr.mxu0 0.0
  %798 = vmatpush2.msra.mxu0 0.0
  %799 = vmatprep.subr.mxu0 0.0
  %800 = vmatpush2.msra.mxu0 0.0
  %801 = vmatprep.subr.mxu0 0.0
  %802 = vmatpush2.msra.mxu0 0.0
  %803 = vmatprep.subr.mxu0 0.0
  %804 = vmatpush2.msra.mxu0 0.0
  %805 = vmatprep.subr.mxu0 0.0
  %806 = vmatpush2.msra.mxu0 0.0
  %807 = vmatprep.subr.mxu0 0.0
  %808 = vmatpush2.msra.mxu0 0.0
  %809 = vmatprep.subr.mxu0 0.0
  %810 = vmatpush2.msra.mxu0 0.0
  %811 = vmatprep.subr.mxu0 0.0
  %812 = vmatpush2.msra.mxu0 0.0
  %813 = vmatprep.subr.mxu0 0.0
  %814 = vmatpush2.msra.mxu0 0.0
  %815 = vmatprep.subr.mxu0 0.0
  %816 = vmatpush2.msra.mxu0 0.0
  %817 = vmatprep.subr.mxu0 0.0
  %818 = vmatpush2.msra.mxu0 0.0
  %819 = vmatprep.subr.mxu0 0.0
  %820 = vmatpush2.msra.mxu0 0.0
  %821 = vmatprep.subr.mxu0 0.0
  %822 = vmatpush2.msra.mxu0 0.0
  %823 = vmatprep.subr.mxu0 0.0
  %824 = vmatpush2.msra.mxu0 0.0
  %825 = vmatprep.subr.mxu0 0.0
  %826 = vmatpush2.msra.mxu0 0.0
  %827 = vmatprep.subr.mxu0 0.0
  %828 = vmatpush2.msra.mxu0 0.0
  %829 = vmatprep.mubr.f32.mxu0 0.0
  %830 = vmatmul.mubr.f32.gmra.mxu0 %v763
  %v831 = vpop.f32.mrf.mxu0
  %v832 = vadd.f32 0.0, %v831
  %v833 = vpop.f32.mrf.mxu0
  %v834 = vadd.f32 0.0, %v833
  %835 = vdwg.mxu0
  %v836 = vadd.f32 %v140, %v832
  %v837 = vxor.u32 %v836, 2147483648
  %v838 = vmul.f32 %v837, 1.442695
  %v839 = vpow.pop %v838
  %v840 = vadd.f32 %v839, 1.0
  %v841 = vrcp.pop %v840
  %v842 = vmul.f32 1.0, %v841
  %v843 = vtanh.pop %v836
  %v844 = vmul.f32 %v842, %v649
  %846 = vrot.lane.b32.xlu0 %v843, 64
  %v847 = vpop.permute.xlu0 %846
  %v849 = vmul.f32 %v842, %v847
  %851 = vrot.lane.b32.xlu0 %v849, 32
  %v852 = vpop.permute.xlu0 %851
  %v854 = vadd.f32 %v844, %v852
  %v855 = vtanh.pop %v854
  %857 = vrot.lane.b32.xlu0 %v855, 64
  %v858 = vpop.permute.xlu0 %857
  %v860 = vmul.f32 %v842, %v858
  %862 = vrot.lane.b32.xlu0 %v860, 32
  %v863 = vpop.permute.xlu0 %862
  %v864 = vsel %vm248, %v863, 0
  %866 = vmatprep.subr.mxu0 0.0
  %867 = vmatpush1.msra.mxu0 0.0
  %868 = vmatprep.subr.mxu0 0.0
  %869 = vmatpush1.msra.mxu0 0.0
  %870 = vmatprep.subr.mxu0 0.0
  %871 = vmatpush1.msra.mxu0 0.0
  %872 = vmatprep.subr.mxu0 0.0
  %873 = vmatpush1.msra.mxu0 0.0
  %874 = vmatprep.subr.mxu0 0.0
  %875 = vmatpush1.msra.mxu0 0.0
  %876 = vmatprep.subr.mxu0 0.0
  %877 = vmatpush1.msra.mxu0 0.0
  %878 = vmatprep.subr.mxu0 0.0
  %879 = vmatpush1.msra.mxu0 0.0
  %880 = vmatprep.subr.mxu0 0.0
  %881 = vmatpush1.msra.mxu0 0.0
  %882 = vmatprep.subr.mxu0 0.0
  %883 = vmatpush1.msra.mxu0 0.0
  %884 = vmatprep.subr.mxu0 0.0
  %885 = vmatpush1.msra.mxu0 0.0
  %886 = vmatprep.subr.mxu0 0.0
  %887 = vmatpush1.msra.mxu0 0.0
  %888 = vmatprep.subr.mxu0 0.0
  %889 = vmatpush1.msra.mxu0 0.0
  %890 = vmatprep.subr.mxu0 0.0
  %891 = vmatpush1.msra.mxu0 %v53
  %892 = vmatprep.subr.mxu0 0.0
  %893 = vmatpush1.msra.mxu0 %v52
  %894 = vmatprep.subr.mxu0 0.0
  %895 = vmatpush1.msra.mxu0 %v51
  %896 = vmatprep.subr.mxu0 0.0
  %897 = vmatpush1.msra.mxu0 %v50
  %898 = vmatprep.subr.mxu0 0.0
  %899 = vmatpush2.msra.mxu0 0.0
  %900 = vmatprep.subr.mxu0 0.0
  %901 = vmatpush2.msra.mxu0 0.0
  %902 = vmatprep.subr.mxu0 0.0
  %903 = vmatpush2.msra.mxu0 0.0
  %904 = vmatprep.subr.mxu0 0.0
  %905 = vmatpush2.msra.mxu0 0.0
  %906 = vmatprep.subr.mxu0 0.0
  %907 = vmatpush2.msra.mxu0 0.0
  %908 = vmatprep.subr.mxu0 0.0
  %909 = vmatpush2.msra.mxu0 0.0
  %910 = vmatprep.subr.mxu0 0.0
  %911 = vmatpush2.msra.mxu0 0.0
  %912 = vmatprep.subr.mxu0 0.0
  %913 = vmatpush2.msra.mxu0 0.0
  %914 = vmatprep.subr.mxu0 0.0
  %915 = vmatpush2.msra.mxu0 0.0
  %916 = vmatprep.subr.mxu0 0.0
  %917 = vmatpush2.msra.mxu0 0.0
  %918 = vmatprep.subr.mxu0 0.0
  %919 = vmatpush2.msra.mxu0 0.0
  %920 = vmatprep.subr.mxu0 0.0
  %921 = vmatpush2.msra.mxu0 0.0
  %922 = vmatprep.subr.mxu0 0.0
  %923 = vmatpush2.msra.mxu0 0.0
  %924 = vmatprep.subr.mxu0 0.0
  %925 = vmatpush2.msra.mxu0 0.0
  %926 = vmatprep.subr.mxu0 0.0
  %927 = vmatpush2.msra.mxu0 0.0
  %928 = vmatprep.subr.mxu0 0.0
  %929 = vmatpush2.msra.mxu0 0.0
  %930 = vmatprep.mubr.f32.mxu0 0.0
  %931 = vmatmul.mubr.f32.gmra.mxu0 %v864
  %v932 = vpop.f32.mrf.mxu0
  %v933 = vadd.f32 %v834, %v932
  %v934 = vpop.f32.mrf.mxu0
  %935 = vdwg.mxu0
  %v936 = vadd.f32 %v933, %v59
  %v937 = vxor.u32 %v936, 2147483648
  %v938 = vmul.f32 %v937, 1.442695
  %v939 = vpow.pop %v938
  %v940 = vadd.f32 %v939, 1.0
  %v941 = vrcp.pop %v940
  %v942 = vmul.f32 1.0, %v941
  %v943 = vtanh.pop %v936
  %v944 = vmul.f32 %v942, %v749
  %946 = vrot.lane.b32.xlu0 %v943, 64
  %v947 = vpop.permute.xlu0 %946
  %v949 = vmul.f32 %v942, %v947
  %951 = vrot.lane.b32.xlu0 %v949, 32
  %v952 = vpop.permute.xlu0 %951
  %v954 = vadd.f32 %v944, %v952
  %v955 = vtanh.pop %v954
  %957 = vrot.lane.b32.xlu0 %v955, 64
  %v958 = vpop.permute.xlu0 %957
  %v960 = vmul.f32 %v942, %v958
  %963 = vrot.lane.b32.xlu0 %v960, 64
  %v964 = vpop.permute.xlu0 %963
  %v966 = vsel %vm248, %v863, %v964
  %v968 = vsel %vm145, %v966, 0
  %970 = vmatprep.subr.mxu0 0.0
  %971 = vmatpush1.msra.mxu0 0.0
  %972 = vmatprep.subr.mxu0 0.0
  %973 = vmatpush1.msra.mxu0 0.0
  %974 = vmatprep.subr.mxu0 0.0
  %975 = vmatpush1.msra.mxu0 0.0
  %976 = vmatprep.subr.mxu0 0.0
  %977 = vmatpush1.msra.mxu0 0.0
  %978 = vmatprep.subr.mxu0 0.0
  %979 = vmatpush1.msra.mxu0 0.0
  %980 = vmatprep.subr.mxu0 0.0
  %981 = vmatpush1.msra.mxu0 0.0
  %982 = vmatprep.subr.mxu0 0.0
  %983 = vmatpush1.msra.mxu0 0.0
  %984 = vmatprep.subr.mxu0 0.0
  %985 = vmatpush1.msra.mxu0 0.0
  %986 = vmatprep.subr.mxu0 %v49
  %987 = vmatpush1.msra.mxu0 %v48
  %988 = vmatprep.subr.mxu0 %v47
  %989 = vmatpush1.msra.mxu0 %v46
  %990 = vmatprep.subr.mxu0 %v45
  %991 = vmatpush1.msra.mxu0 %v44
  %992 = vmatprep.subr.mxu0 %v43
  %993 = vmatpush1.msra.mxu0 %v42
  %994 = vmatprep.subr.mxu0 %v41
  %995 = vmatpush1.msra.mxu0 %v40
  %996 = vmatprep.subr.mxu0 %v39
  %997 = vmatpush1.msra.mxu0 %v38
  %998 = vmatprep.subr.mxu0 %v37
  %999 = vmatpush1.msra.mxu0 %v36
  %1000 = vmatprep.subr.mxu0 %v35
  %1001 = vmatpush1.msra.mxu0 %v34
  %1002 = vmatprep.subr.mxu0 0.0
  %1003 = vmatpush2.msra.mxu0 0.0
  %1004 = vmatprep.subr.mxu0 0.0
  %1005 = vmatpush2.msra.mxu0 0.0
  %1006 = vmatprep.subr.mxu0 0.0
  %1007 = vmatpush2.msra.mxu0 0.0
  %1008 = vmatprep.subr.mxu0 0.0
  %1009 = vmatpush2.msra.mxu0 0.0
  %1010 = vmatprep.subr.mxu0 0.0
  %1011 = vmatpush2.msra.mxu0 0.0
  %1012 = vmatprep.subr.mxu0 0.0
  %1013 = vmatpush2.msra.mxu0 0.0
  %1014 = vmatprep.subr.mxu0 0.0
  %1015 = vmatpush2.msra.mxu0 0.0
  %1016 = vmatprep.subr.mxu0 0.0
  %1017 = vmatpush2.msra.mxu0 0.0
  %1018 = vmatprep.subr.mxu0 0.0
  %1019 = vmatpush2.msra.mxu0 0.0
  %1020 = vmatprep.subr.mxu0 0.0
  %1021 = vmatpush2.msra.mxu0 0.0
  %1022 = vmatprep.subr.mxu0 0.0
  %1023 = vmatpush2.msra.mxu0 0.0
  %1024 = vmatprep.subr.mxu0 0.0
  %1025 = vmatpush2.msra.mxu0 0.0
  %1026 = vmatprep.subr.mxu0 0.0
  %1027 = vmatpush2.msra.mxu0 0.0
  %1028 = vmatprep.subr.mxu0 0.0
  %1029 = vmatpush2.msra.mxu0 0.0
  %1030 = vmatprep.subr.mxu0 0.0
  %1031 = vmatpush2.msra.mxu0 0.0
  %1032 = vmatprep.subr.mxu0 0.0
  %1033 = vmatpush2.msra.mxu0 0.0
  %1034 = vmatprep.mubr.f32.mxu0 0.0
  %1035 = vmatmul.mubr.f32.gmra.mxu0 %v968
  %v1036 = vpop.f32.mrf.mxu0
  %v1037 = vadd.f32 0.0, %v1036
  %v1038 = vpop.f32.mrf.mxu0
  %v1039 = vadd.f32 0.0, %v1038
  %1040 = vdwg.mxu0
  %v1041 = vadd.f32 %v141, %v1037
  %v1042 = vxor.u32 %v1041, 2147483648
  %v1043 = vmul.f32 %v1042, 1.442695
  %v1044 = vpow.pop %v1043
  %v1045 = vadd.f32 %v1044, 1.0
  %v1046 = vrcp.pop %v1045
  %v1047 = vmul.f32 1.0, %v1046
  %v1048 = vtanh.pop %v1041
  %v1049 = vmul.f32 %v1047, %v854
  %1051 = vrot.lane.b32.xlu0 %v1048, 64
  %v1052 = vpop.permute.xlu0 %1051
  %v1054 = vmul.f32 %v1047, %v1052
  %1056 = vrot.lane.b32.xlu0 %v1054, 32
  %v1057 = vpop.permute.xlu0 %1056
  %v1059 = vadd.f32 %v1049, %v1057
  %v1060 = vtanh.pop %v1059
  %1062 = vrot.lane.b32.xlu0 %v1060, 64
  %v1063 = vpop.permute.xlu0 %1062
  %v1065 = vmul.f32 %v1047, %v1063
  %1067 = vrot.lane.b32.xlu0 %v1065, 32
  %v1068 = vpop.permute.xlu0 %1067
  %v1069 = vsel %vm248, %v1068, 0
  %1071 = vmatprep.subr.mxu0 0.0
  %1072 = vmatpush1.msra.mxu0 0.0
  %1073 = vmatprep.subr.mxu0 0.0
  %1074 = vmatpush1.msra.mxu0 0.0
  %1075 = vmatprep.subr.mxu0 0.0
  %1076 = vmatpush1.msra.mxu0 0.0
  %1077 = vmatprep.subr.mxu0 0.0
  %1078 = vmatpush1.msra.mxu0 0.0
  %1079 = vmatprep.subr.mxu0 0.0
  %1080 = vmatpush1.msra.mxu0 0.0
  %1081 = vmatprep.subr.mxu0 0.0
  %1082 = vmatpush1.msra.mxu0 0.0
  %1083 = vmatprep.subr.mxu0 0.0
  %1084 = vmatpush1.msra.mxu0 0.0
  %1085 = vmatprep.subr.mxu0 0.0
  %1086 = vmatpush1.msra.mxu0 0.0
  %1087 = vmatprep.subr.mxu0 0.0
  %1088 = vmatpush1.msra.mxu0 0.0
  %1089 = vmatprep.subr.mxu0 0.0
  %1090 = vmatpush1.msra.mxu0 0.0
  %1091 = vmatprep.subr.mxu0 0.0
  %1092 = vmatpush1.msra.mxu0 0.0
  %1093 = vmatprep.subr.mxu0 0.0
  %1094 = vmatpush1.msra.mxu0 0.0
  %1095 = vmatprep.subr.mxu0 0.0
  %1096 = vmatpush1.msra.mxu0 %v53
  %1097 = vmatprep.subr.mxu0 0.0
  %1098 = vmatpush1.msra.mxu0 %v52
  %1099 = vmatprep.subr.mxu0 0.0
  %1100 = vmatpush1.msra.mxu0 %v51
  %1101 = vmatprep.subr.mxu0 0.0
  %1102 = vmatpush1.msra.mxu0 %v50
  %1103 = vmatprep.subr.mxu0 0.0
  %1104 = vmatpush2.msra.mxu0 0.0
  %1105 = vmatprep.subr.mxu0 0.0
  %1106 = vmatpush2.msra.mxu0 0.0
  %1107 = vmatprep.subr.mxu0 0.0
  %1108 = vmatpush2.msra.mxu0 0.0
  %1109 = vmatprep.subr.mxu0 0.0
  %1110 = vmatpush2.msra.mxu0 0.0
  %1111 = vmatprep.subr.mxu0 0.0
  %1112 = vmatpush2.msra.mxu0 0.0
  %1113 = vmatprep.subr.mxu0 0.0
  %1114 = vmatpush2.msra.mxu0 0.0
  %1115 = vmatprep.subr.mxu0 0.0
  %1116 = vmatpush2.msra.mxu0 0.0
  %1117 = vmatprep.subr.mxu0 0.0
  %1118 = vmatpush2.msra.mxu0 0.0
  %1119 = vmatprep.subr.mxu0 0.0
  %1120 = vmatpush2.msra.mxu0 0.0
  %1121 = vmatprep.subr.mxu0 0.0
  %1122 = vmatpush2.msra.mxu0 0.0
  %1123 = vmatprep.subr.mxu0 0.0
  %1124 = vmatpush2.msra.mxu0 0.0
  %1125 = vmatprep.subr.mxu0 0.0
  %1126 = vmatpush2.msra.mxu0 0.0
  %1127 = vmatprep.subr.mxu0 0.0
  %1128 = vmatpush2.msra.mxu0 0.0
  %1129 = vmatprep.subr.mxu0 0.0
  %1130 = vmatpush2.msra.mxu0 0.0
  %1131 = vmatprep.subr.mxu0 0.0
  %1132 = vmatpush2.msra.mxu0 0.0
  %1133 = vmatprep.subr.mxu0 0.0
  %1134 = vmatpush2.msra.mxu0 0.0
  %1135 = vmatprep.mubr.f32.mxu0 0.0
  %1136 = vmatmul.mubr.f32.gmra.mxu0 %v1069
  %v1137 = vpop.f32.mrf.mxu0
  %v1138 = vadd.f32 %v1039, %v1137
  %v1139 = vpop.f32.mrf.mxu0
  %1140 = vdwg.mxu0
  %v1141 = vadd.f32 %v1138, %v59
  %v1142 = vxor.u32 %v1141, 2147483648
  %v1143 = vmul.f32 %v1142, 1.442695
  %v1144 = vpow.pop %v1143
  %v1145 = vadd.f32 %v1144, 1.0
  %v1146 = vrcp.pop %v1145
  %v1147 = vmul.f32 1.0, %v1146
  %v1148 = vtanh.pop %v1141
  %v1149 = vmul.f32 %v1147, %v954
  %1151 = vrot.lane.b32.xlu0 %v1148, 64
  %v1152 = vpop.permute.xlu0 %1151
  %v1154 = vmul.f32 %v1147, %v1152
  %1156 = vrot.lane.b32.xlu0 %v1154, 32
  %v1157 = vpop.permute.xlu0 %1156
  %v1159 = vadd.f32 %v1149, %v1157
  %v1160 = vtanh.pop %v1159
  %1162 = vrot.lane.b32.xlu0 %v1160, 64
  %v1163 = vpop.permute.xlu0 %1162
  %v1165 = vmul.f32 %v1147, %v1163
  %1168 = vrot.lane.b32.xlu0 %v1165, 64
  %v1169 = vpop.permute.xlu0 %1168
  %v1171 = vsel %vm248, %v1068, %v1169
  %v1173 = vsel %vm145, %v1171, 0
  %1175 = vmatprep.subr.mxu0 0.0
  %1176 = vmatpush1.msra.mxu0 0.0
  %1177 = vmatprep.subr.mxu0 0.0
  %1178 = vmatpush1.msra.mxu0 0.0
  %1179 = vmatprep.subr.mxu0 0.0
  %1180 = vmatpush1.msra.mxu0 0.0
  %1181 = vmatprep.subr.mxu0 0.0
  %1182 = vmatpush1.msra.mxu0 0.0
  %1183 = vmatprep.subr.mxu0 0.0
  %1184 = vmatpush1.msra.mxu0 0.0
  %1185 = vmatprep.subr.mxu0 0.0
  %1186 = vmatpush1.msra.mxu0 0.0
  %1187 = vmatprep.subr.mxu0 0.0
  %1188 = vmatpush1.msra.mxu0 0.0
  %1189 = vmatprep.subr.mxu0 0.0
  %1190 = vmatpush1.msra.mxu0 0.0
  %1191 = vmatprep.subr.mxu0 %v49
  %1192 = vmatpush1.msra.mxu0 %v48
  %1193 = vmatprep.subr.mxu0 %v47
  %1194 = vmatpush1.msra.mxu0 %v46
  %1195 = vmatprep.subr.mxu0 %v45
  %1196 = vmatpush1.msra.mxu0 %v44
  %1197 = vmatprep.subr.mxu0 %v43
  %1198 = vmatpush1.msra.mxu0 %v42
  %1199 = vmatprep.subr.mxu0 %v41
  %1200 = vmatpush1.msra.mxu0 %v40
  %1201 = vmatprep.subr.mxu0 %v39
  %1202 = vmatpush1.msra.mxu0 %v38
  %1203 = vmatprep.subr.mxu0 %v37
  %1204 = vmatpush1.msra.mxu0 %v36
  %1205 = vmatprep.subr.mxu0 %v35
  %1206 = vmatpush1.msra.mxu0 %v34
  %1207 = vmatprep.subr.mxu0 0.0
  %1208 = vmatpush2.msra.mxu0 0.0
  %1209 = vmatprep.subr.mxu0 0.0
  %1210 = vmatpush2.msra.mxu0 0.0
  %1211 = vmatprep.subr.mxu0 0.0
  %1212 = vmatpush2.msra.mxu0 0.0
  %1213 = vmatprep.subr.mxu0 0.0
  %1214 = vmatpush2.msra.mxu0 0.0
  %1215 = vmatprep.subr.mxu0 0.0
  %1216 = vmatpush2.msra.mxu0 0.0
  %1217 = vmatprep.subr.mxu0 0.0
  %1218 = vmatpush2.msra.mxu0 0.0
  %1219 = vmatprep.subr.mxu0 0.0
  %1220 = vmatpush2.msra.mxu0 0.0
  %1221 = vmatprep.subr.mxu0 0.0
  %1222 = vmatpush2.msra.mxu0 0.0
  %1223 = vmatprep.subr.mxu0 0.0
  %1224 = vmatpush2.msra.mxu0 0.0
  %1225 = vmatprep.subr.mxu0 0.0
  %1226 = vmatpush2.msra.mxu0 0.0
  %1227 = vmatprep.subr.mxu0 0.0
  %1228 = vmatpush2.msra.mxu0 0.0
  %1229 = vmatprep.subr.mxu0 0.0
  %1230 = vmatpush2.msra.mxu0 0.0
  %1231 = vmatprep.subr.mxu0 0.0
  %1232 = vmatpush2.msra.mxu0 0.0
  %1233 = vmatprep.subr.mxu0 0.0
  %1234 = vmatpush2.msra.mxu0 0.0
  %1235 = vmatprep.subr.mxu0 0.0
  %1236 = vmatpush2.msra.mxu0 0.0
  %1237 = vmatprep.subr.mxu0 0.0
  %1238 = vmatpush2.msra.mxu0 0.0
  %1239 = vmatprep.mubr.f32.mxu0 0.0
  %1240 = vmatmul.mubr.f32.gmra.mxu0 %v1173
  %v1241 = vpop.f32.mrf.mxu0
  %v1242 = vadd.f32 0.0, %v1241
  %v1243 = vpop.f32.mrf.mxu0
  %v1244 = vadd.f32 0.0, %v1243
  %1245 = vdwg.mxu0
  %v1246 = vadd.f32 %v142, %v1242
  %v1247 = vxor.u32 %v1246, 2147483648
  %v1248 = vmul.f32 %v1247, 1.442695
  %v1249 = vpow.pop %v1248
  %v1250 = vadd.f32 %v1249, 1.0
  %v1251 = vrcp.pop %v1250
  %v1252 = vmul.f32 1.0, %v1251
  %v1253 = vtanh.pop %v1246
  %v1254 = vmul.f32 %v1252, %v1059
  %1256 = vrot.lane.b32.xlu0 %v1253, 64
  %v1257 = vpop.permute.xlu0 %1256
  %v1259 = vmul.f32 %v1252, %v1257
  %1261 = vrot.lane.b32.xlu0 %v1259, 32
  %v1262 = vpop.permute.xlu0 %1261
  %v1264 = vadd.f32 %v1254, %v1262
  %v1265 = vtanh.pop %v1264
  %1267 = vrot.lane.b32.xlu0 %v1265, 64
  %v1268 = vpop.permute.xlu0 %1267
  %v1270 = vmul.f32 %v1252, %v1268
  %1272 = vrot.lane.b32.xlu0 %v1270, 32
  %v1273 = vpop.permute.xlu0 %1272
  %v1274 = vsel %vm248, %v1273, 0
  %1276 = vmatprep.subr.mxu0 0.0
  %1277 = vmatpush1.msra.mxu0 0.0
  %1278 = vmatprep.subr.mxu0 0.0
  %1279 = vmatpush1.msra.mxu0 0.0
  %1280 = vmatprep.subr.mxu0 0.0
  %1281 = vmatpush1.msra.mxu0 0.0
  %1282 = vmatprep.subr.mxu0 0.0
  %1283 = vmatpush1.msra.mxu0 0.0
  %1284 = vmatprep.subr.mxu0 0.0
  %1285 = vmatpush1.msra.mxu0 0.0
  %1286 = vmatprep.subr.mxu0 0.0
  %1287 = vmatpush1.msra.mxu0 0.0
  %1288 = vmatprep.subr.mxu0 0.0
  %1289 = vmatpush1.msra.mxu0 0.0
  %1290 = vmatprep.subr.mxu0 0.0
  %1291 = vmatpush1.msra.mxu0 0.0
  %1292 = vmatprep.subr.mxu0 0.0
  %1293 = vmatpush1.msra.mxu0 0.0
  %1294 = vmatprep.subr.mxu0 0.0
  %1295 = vmatpush1.msra.mxu0 0.0
  %1296 = vmatprep.subr.mxu0 0.0
  %1297 = vmatpush1.msra.mxu0 0.0
  %1298 = vmatprep.subr.mxu0 0.0
  %1299 = vmatpush1.msra.mxu0 0.0
  %1300 = vmatprep.subr.mxu0 0.0
  %1301 = vmatpush1.msra.mxu0 %v53
  %1302 = vmatprep.subr.mxu0 0.0
  %1303 = vmatpush1.msra.mxu0 %v52
  %1304 = vmatprep.subr.mxu0 0.0
  %1305 = vmatpush1.msra.mxu0 %v51
  %1306 = vmatprep.subr.mxu0 0.0
  %1307 = vmatpush1.msra.mxu0 %v50
  %1308 = vmatprep.subr.mxu0 0.0
  %1309 = vmatpush2.msra.mxu0 0.0
  %1310 = vmatprep.subr.mxu0 0.0
  %1311 = vmatpush2.msra.mxu0 0.0
  %1312 = vmatprep.subr.mxu0 0.0
  %1313 = vmatpush2.msra.mxu0 0.0
  %1314 = vmatprep.subr.mxu0 0.0
  %1315 = vmatpush2.msra.mxu0 0.0
  %1316 = vmatprep.subr.mxu0 0.0
  %1317 = vmatpush2.msra.mxu0 0.0
  %1318 = vmatprep.subr.mxu0 0.0
  %1319 = vmatpush2.msra.mxu0 0.0
  %1320 = vmatprep.subr.mxu0 0.0
  %1321 = vmatpush2.msra.mxu0 0.0
  %1322 = vmatprep.subr.mxu0 0.0
  %1323 = vmatpush2.msra.mxu0 0.0
  %1324 = vmatprep.subr.mxu0 0.0
  %1325 = vmatpush2.msra.mxu0 0.0
  %1326 = vmatprep.subr.mxu0 0.0
  %1327 = vmatpush2.msra.mxu0 0.0
  %1328 = vmatprep.subr.mxu0 0.0
  %1329 = vmatpush2.msra.mxu0 0.0
  %1330 = vmatprep.subr.mxu0 0.0
  %1331 = vmatpush2.msra.mxu0 0.0
  %1332 = vmatprep.subr.mxu0 0.0
  %1333 = vmatpush2.msra.mxu0 0.0
  %1334 = vmatprep.subr.mxu0 0.0
  %1335 = vmatpush2.msra.mxu0 0.0
  %1336 = vmatprep.subr.mxu0 0.0
  %1337 = vmatpush2.msra.mxu0 0.0
  %1338 = vmatprep.subr.mxu0 0.0
  %1339 = vmatpush2.msra.mxu0 0.0
  %1340 = vmatprep.mubr.f32.mxu0 0.0
  %1341 = vmatmul.mubr.f32.gmra.mxu0 %v1274
  %v1342 = vpop.f32.mrf.mxu0
  %v1343 = vadd.f32 %v1244, %v1342
  %v1344 = vpop.f32.mrf.mxu0
  %1345 = vdwg.mxu0
  %v1346 = vadd.f32 %v1343, %v59
  %v1347 = vxor.u32 %v1346, 2147483648
  %v1348 = vmul.f32 %v1347, 1.442695
  %v1349 = vpow.pop %v1348
  %v1350 = vadd.f32 %v1349, 1.0
  %v1351 = vrcp.pop %v1350
  %v1352 = vmul.f32 1.0, %v1351
  %v1353 = vtanh.pop %v1346
  %v1354 = vmul.f32 %v1352, %v1159
  %1356 = vrot.lane.b32.xlu0 %v1353, 64
  %v1357 = vpop.permute.xlu0 %1356
  %v1359 = vmul.f32 %v1352, %v1357
  %1361 = vrot.lane.b32.xlu0 %v1359, 32
  %v1362 = vpop.permute.xlu0 %1361
  %v1364 = vadd.f32 %v1354, %v1362
  %v1365 = vtanh.pop %v1364
  %1367 = vrot.lane.b32.xlu0 %v1365, 64
  %v1368 = vpop.permute.xlu0 %1367
  %v1370 = vmul.f32 %v1352, %v1368
  %1373 = vrot.lane.b32.xlu0 %v1370, 64
  %v1374 = vpop.permute.xlu0 %1373
  %v1376 = vsel %vm248, %v1273, %v1374
  %v1378 = vsel %vm145, %v1376, 0
  %1380 = vmatprep.subr.mxu0 0.0
  %1381 = vmatpush1.msra.mxu0 0.0
  %1382 = vmatprep.subr.mxu0 0.0
  %1383 = vmatpush1.msra.mxu0 0.0
  %1384 = vmatprep.subr.mxu0 0.0
  %1385 = vmatpush1.msra.mxu0 0.0
  %1386 = vmatprep.subr.mxu0 0.0
  %1387 = vmatpush1.msra.mxu0 0.0
  %1388 = vmatprep.subr.mxu0 0.0
  %1389 = vmatpush1.msra.mxu0 0.0
  %1390 = vmatprep.subr.mxu0 0.0
  %1391 = vmatpush1.msra.mxu0 0.0
  %1392 = vmatprep.subr.mxu0 0.0
  %1393 = vmatpush1.msra.mxu0 0.0
  %1394 = vmatprep.subr.mxu0 0.0
  %1395 = vmatpush1.msra.mxu0 0.0
  %1396 = vmatprep.subr.mxu0 %v49
  %1397 = vmatpush1.msra.mxu0 %v48
  %1398 = vmatprep.subr.mxu0 %v47
  %1399 = vmatpush1.msra.mxu0 %v46
  %1400 = vmatprep.subr.mxu0 %v45
  %1401 = vmatpush1.msra.mxu0 %v44
  %1402 = vmatprep.subr.mxu0 %v43
  %1403 = vmatpush1.msra.mxu0 %v42
  %1404 = vmatprep.subr.mxu0 %v41
  %1405 = vmatpush1.msra.mxu0 %v40
  %1406 = vmatprep.subr.mxu0 %v39
  %1407 = vmatpush1.msra.mxu0 %v38
  %1408 = vmatprep.subr.mxu0 %v37
  %1409 = vmatpush1.msra.mxu0 %v36
  %1410 = vmatprep.subr.mxu0 %v35
  %1411 = vmatpush1.msra.mxu0 %v34
  %1412 = vmatprep.subr.mxu0 0.0
  %1413 = vmatpush2.msra.mxu0 0.0
  %1414 = vmatprep.subr.mxu0 0.0
  %1415 = vmatpush2.msra.mxu0 0.0
  %1416 = vmatprep.subr.mxu0 0.0
  %1417 = vmatpush2.msra.mxu0 0.0
  %1418 = vmatprep.subr.mxu0 0.0
  %1419 = vmatpush2.msra.mxu0 0.0
  %1420 = vmatprep.subr.mxu0 0.0
  %1421 = vmatpush2.msra.mxu0 0.0
  %1422 = vmatprep.subr.mxu0 0.0
  %1423 = vmatpush2.msra.mxu0 0.0
  %1424 = vmatprep.subr.mxu0 0.0
  %1425 = vmatpush2.msra.mxu0 0.0
  %1426 = vmatprep.subr.mxu0 0.0
  %1427 = vmatpush2.msra.mxu0 0.0
  %1428 = vmatprep.subr.mxu0 0.0
  %1429 = vmatpush2.msra.mxu0 0.0
  %1430 = vmatprep.subr.mxu0 0.0
  %1431 = vmatpush2.msra.mxu0 0.0
  %1432 = vmatprep.subr.mxu0 0.0
  %1433 = vmatpush2.msra.mxu0 0.0
  %1434 = vmatprep.subr.mxu0 0.0
  %1435 = vmatpush2.msra.mxu0 0.0
  %1436 = vmatprep.subr.mxu0 0.0
  %1437 = vmatpush2.msra.mxu0 0.0
  %1438 = vmatprep.subr.mxu0 0.0
  %1439 = vmatpush2.msra.mxu0 0.0
  %1440 = vmatprep.subr.mxu0 0.0
  %1441 = vmatpush2.msra.mxu0 0.0
  %1442 = vmatprep.subr.mxu0 0.0
  %1443 = vmatpush2.msra.mxu0 0.0
  %1444 = vmatprep.mubr.f32.mxu0 0.0
  %1445 = vmatmul.mubr.f32.gmra.mxu0 %v1378
  %v1446 = vpop.f32.mrf.mxu0
  %v1447 = vadd.f32 0.0, %v1446
  %v1448 = vpop.f32.mrf.mxu0
  %v1449 = vadd.f32 0.0, %v1448
  %1450 = vdwg.mxu0
  %v1451 = vadd.f32 %v143, %v1447
  %v1452 = vxor.u32 %v1451, 2147483648
  %v1453 = vmul.f32 %v1452, 1.442695
  %v1454 = vpow.pop %v1453
  %v1455 = vadd.f32 %v1454, 1.0
  %v1456 = vrcp.pop %v1455
  %v1457 = vmul.f32 1.0, %v1456
  %v1458 = vtanh.pop %v1451
  %v1459 = vmul.f32 %v1457, %v1264
  %1461 = vrot.lane.b32.xlu0 %v1458, 64
  %v1462 = vpop.permute.xlu0 %1461
  %v1464 = vmul.f32 %v1457, %v1462
  %1466 = vrot.lane.b32.xlu0 %v1464, 32
  %v1467 = vpop.permute.xlu0 %1466
  %v1469 = vadd.f32 %v1459, %v1467
  %v1470 = vtanh.pop %v1469
  %1472 = vrot.lane.b32.xlu0 %v1470, 64
  %v1473 = vpop.permute.xlu0 %1472
  %v1475 = vmul.f32 %v1457, %v1473
  %1477 = vrot.lane.b32.xlu0 %v1475, 32
  %v1478 = vpop.permute.xlu0 %1477
  %v1479 = vsel %vm248, %v1478, 0
  %1481 = vmatprep.subr.mxu0 0.0
  %1482 = vmatpush1.msra.mxu0 0.0
  %1483 = vmatprep.subr.mxu0 0.0
  %1484 = vmatpush1.msra.mxu0 0.0
  %1485 = vmatprep.subr.mxu0 0.0
  %1486 = vmatpush1.msra.mxu0 0.0
  %1487 = vmatprep.subr.mxu0 0.0
  %1488 = vmatpush1.msra.mxu0 0.0
  %1489 = vmatprep.subr.mxu0 0.0
  %1490 = vmatpush1.msra.mxu0 0.0
  %1491 = vmatprep.subr.mxu0 0.0
  %1492 = vmatpush1.msra.mxu0 0.0
  %1493 = vmatprep.subr.mxu0 0.0
  %1494 = vmatpush1.msra.mxu0 0.0
  %1495 = vmatprep.subr.mxu0 0.0
  %1496 = vmatpush1.msra.mxu0 0.0
  %1497 = vmatprep.subr.mxu0 0.0
  %1498 = vmatpush1.msra.mxu0 0.0
  %1499 = vmatprep.subr.mxu0 0.0
  %1500 = vmatpush1.msra.mxu0 0.0
  %1501 = vmatprep.subr.mxu0 0.0
  %1502 = vmatpush1.msra.mxu0 0.0
  %1503 = vmatprep.subr.mxu0 0.0
  %1504 = vmatpush1.msra.mxu0 0.0
  %1505 = vmatprep.subr.mxu0 0.0
  %1506 = vmatpush1.msra.mxu0 %v53
  %1507 = vmatprep.subr.mxu0 0.0
  %1508 = vmatpush1.msra.mxu0 %v52
  %1509 = vmatprep.subr.mxu0 0.0
  %1510 = vmatpush1.msra.mxu0 %v51
  %1511 = vmatprep.subr.mxu0 0.0
  %1512 = vmatpush1.msra.mxu0 %v50
  %1513 = vmatprep.subr.mxu0 0.0
  %1514 = vmatpush2.msra.mxu0 0.0
  %1515 = vmatprep.subr.mxu0 0.0
  %1516 = vmatpush2.msra.mxu0 0.0
  %1517 = vmatprep.subr.mxu0 0.0
  %1518 = vmatpush2.msra.mxu0 0.0
  %1519 = vmatprep.subr.mxu0 0.0
  %1520 = vmatpush2.msra.mxu0 0.0
  %1521 = vmatprep.subr.mxu0 0.0
  %1522 = vmatpush2.msra.mxu0 0.0
  %1523 = vmatprep.subr.mxu0 0.0
  %1524 = vmatpush2.msra.mxu0 0.0
  %1525 = vmatprep.subr.mxu0 0.0
  %1526 = vmatpush2.msra.mxu0 0.0
  %1527 = vmatprep.subr.mxu0 0.0
  %1528 = vmatpush2.msra.mxu0 0.0
  %1529 = vmatprep.subr.mxu0 0.0
  %1530 = vmatpush2.msra.mxu0 0.0
  %1531 = vmatprep.subr.mxu0 0.0
  %1532 = vmatpush2.msra.mxu0 0.0
  %1533 = vmatprep.subr.mxu0 0.0
  %1534 = vmatpush2.msra.mxu0 0.0
  %1535 = vmatprep.subr.mxu0 0.0
  %1536 = vmatpush2.msra.mxu0 0.0
  %1537 = vmatprep.subr.mxu0 0.0
  %1538 = vmatpush2.msra.mxu0 0.0
  %1539 = vmatprep.subr.mxu0 0.0
  %1540 = vmatpush2.msra.mxu0 0.0
  %1541 = vmatprep.subr.mxu0 0.0
  %1542 = vmatpush2.msra.mxu0 0.0
  %1543 = vmatprep.subr.mxu0 0.0
  %1544 = vmatpush2.msra.mxu0 0.0
  %1545 = vmatprep.mubr.f32.mxu0 0.0
  %1546 = vmatmul.mubr.f32.gmra.mxu0 %v1479
  %v1547 = vpop.f32.mrf.mxu0
  %v1548 = vadd.f32 %v1449, %v1547
  %v1549 = vpop.f32.mrf.mxu0
  %1550 = vdwg.mxu0
  %v1551 = vadd.f32 %v1548, %v59
  %v1552 = vxor.u32 %v1551, 2147483648
  %v1553 = vmul.f32 %v1552, 1.442695
  %v1554 = vpow.pop %v1553
  %v1555 = vadd.f32 %v1554, 1.0
  %v1556 = vrcp.pop %v1555
  %v1557 = vmul.f32 1.0, %v1556
  %v1558 = vtanh.pop %v1551
  %v1559 = vmul.f32 %v1557, %v1364
  %1561 = vrot.lane.b32.xlu0 %v1558, 64
  %v1562 = vpop.permute.xlu0 %1561
  %v1564 = vmul.f32 %v1557, %v1562
  %1566 = vrot.lane.b32.xlu0 %v1564, 32
  %v1567 = vpop.permute.xlu0 %1566
  %v1569 = vadd.f32 %v1559, %v1567
  %v1570 = vtanh.pop %v1569
  %1572 = vrot.lane.b32.xlu0 %v1570, 64
  %v1573 = vpop.permute.xlu0 %1572
  %v1575 = vmul.f32 %v1557, %v1573
  %1578 = vrot.lane.b32.xlu0 %v1575, 64
  %v1579 = vpop.permute.xlu0 %1578
  %v1581 = vsel %vm248, %v1478, %v1579
  %v1583 = vsel %vm145, %v1581, 0
  %1585 = vmatprep.subr.mxu0 0.0
  %1586 = vmatpush1.msra.mxu0 0.0
  %1587 = vmatprep.subr.mxu0 0.0
  %1588 = vmatpush1.msra.mxu0 0.0
  %1589 = vmatprep.subr.mxu0 0.0
  %1590 = vmatpush1.msra.mxu0 0.0
  %1591 = vmatprep.subr.mxu0 0.0
  %1592 = vmatpush1.msra.mxu0 0.0
  %1593 = vmatprep.subr.mxu0 0.0
  %1594 = vmatpush1.msra.mxu0 0.0
  %1595 = vmatprep.subr.mxu0 0.0
  %1596 = vmatpush1.msra.mxu0 0.0
  %1597 = vmatprep.subr.mxu0 0.0
  %1598 = vmatpush1.msra.mxu0 0.0
  %1599 = vmatprep.subr.mxu0 0.0
  %1600 = vmatpush1.msra.mxu0 0.0
  %1601 = vmatprep.subr.mxu0 %v49
  %1602 = vmatpush1.msra.mxu0 %v48
  %1603 = vmatprep.subr.mxu0 %v47
  %1604 = vmatpush1.msra.mxu0 %v46
  %1605 = vmatprep.subr.mxu0 %v45
  %1606 = vmatpush1.msra.mxu0 %v44
  %1607 = vmatprep.subr.mxu0 %v43
  %1608 = vmatpush1.msra.mxu0 %v42
  %1609 = vmatprep.subr.mxu0 %v41
  %1610 = vmatpush1.msra.mxu0 %v40
  %1611 = vmatprep.subr.mxu0 %v39
  %1612 = vmatpush1.msra.mxu0 %v38
  %1613 = vmatprep.subr.mxu0 %v37
  %1614 = vmatpush1.msra.mxu0 %v36
  %1615 = vmatprep.subr.mxu0 %v35
  %1616 = vmatpush1.msra.mxu0 %v34
  %1617 = vmatprep.subr.mxu0 0.0
  %1618 = vmatpush2.msra.mxu0 0.0
  %1619 = vmatprep.subr.mxu0 0.0
  %1620 = vmatpush2.msra.mxu0 0.0
  %1621 = vmatprep.subr.mxu0 0.0
  %1622 = vmatpush2.msra.mxu0 0.0
  %1623 = vmatprep.subr.mxu0 0.0
  %1624 = vmatpush2.msra.mxu0 0.0
  %1625 = vmatprep.subr.mxu0 0.0
  %1626 = vmatpush2.msra.mxu0 0.0
  %1627 = vmatprep.subr.mxu0 0.0
  %1628 = vmatpush2.msra.mxu0 0.0
  %1629 = vmatprep.subr.mxu0 0.0
  %1630 = vmatpush2.msra.mxu0 0.0
  %1631 = vmatprep.subr.mxu0 0.0
  %1632 = vmatpush2.msra.mxu0 0.0
  %1633 = vmatprep.subr.mxu0 0.0
  %1634 = vmatpush2.msra.mxu0 0.0
  %1635 = vmatprep.subr.mxu0 0.0
  %1636 = vmatpush2.msra.mxu0 0.0
  %1637 = vmatprep.subr.mxu0 0.0
  %1638 = vmatpush2.msra.mxu0 0.0
  %1639 = vmatprep.subr.mxu0 0.0
  %1640 = vmatpush2.msra.mxu0 0.0
  %1641 = vmatprep.subr.mxu0 0.0
  %1642 = vmatpush2.msra.mxu0 0.0
  %1643 = vmatprep.subr.mxu0 0.0
  %1644 = vmatpush2.msra.mxu0 0.0
  %1645 = vmatprep.subr.mxu0 0.0
  %1646 = vmatpush2.msra.mxu0 0.0
  %1647 = vmatprep.subr.mxu0 0.0
  %1648 = vmatpush2.msra.mxu0 0.0
  %1649 = vmatprep.mubr.f32.mxu0 0.0
  %1650 = vmatmul.mubr.f32.gmra.mxu0 %v1583
  %v1651 = vpop.f32.mrf.mxu0
  %v1652 = vadd.f32 0.0, %v1651
  %v1653 = vpop.f32.mrf.mxu0
  %v1654 = vadd.f32 0.0, %v1653
  %1655 = vdwg.mxu0
  %v1656 = vadd.f32 %v144, %v1652
  %v1657 = vxor.u32 %v1656, 2147483648
  %v1658 = vmul.f32 %v1657, 1.442695
  %v1659 = vpow.pop %v1658
  %v1660 = vadd.f32 %v1659, 1.0
  %v1661 = vrcp.pop %v1660
  %v1662 = vmul.f32 1.0, %v1661
  %v1663 = vtanh.pop %v1656
  %v1664 = vmul.f32 %v1662, %v1469
  %1666 = vrot.lane.b32.xlu0 %v1663, 64
  %v1667 = vpop.permute.xlu0 %1666
  %v1669 = vmul.f32 %v1662, %v1667
  %1671 = vrot.lane.b32.xlu0 %v1669, 32
  %v1672 = vpop.permute.xlu0 %1671
  %v1674 = vadd.f32 %v1664, %v1672
  %v1675 = vtanh.pop %v1674
  %1677 = vrot.lane.b32.xlu0 %v1675, 64
  %v1678 = vpop.permute.xlu0 %1677
  %v1680 = vmul.f32 %v1662, %v1678
  %1682 = vrot.lane.b32.xlu0 %v1680, 32
  %v1683 = vpop.permute.xlu0 %1682
  %v1684 = vsel %vm248, %v1683, 0
  %1686 = vmatprep.subr.mxu0 0.0
  %1687 = vmatpush1.msra.mxu0 0.0
  %1688 = vmatprep.subr.mxu0 0.0
  %1689 = vmatpush1.msra.mxu0 0.0
  %1690 = vmatprep.subr.mxu0 0.0
  %1691 = vmatpush1.msra.mxu0 0.0
  %1692 = vmatprep.subr.mxu0 0.0
  %1693 = vmatpush1.msra.mxu0 0.0
  %1694 = vmatprep.subr.mxu0 0.0
  %1695 = vmatpush1.msra.mxu0 0.0
  %1696 = vmatprep.subr.mxu0 0.0
  %1697 = vmatpush1.msra.mxu0 0.0
  %1698 = vmatprep.subr.mxu0 0.0
  %1699 = vmatpush1.msra.mxu0 0.0
  %1700 = vmatprep.subr.mxu0 0.0
  %1701 = vmatpush1.msra.mxu0 0.0
  %1702 = vmatprep.subr.mxu0 0.0
  %1703 = vmatpush1.msra.mxu0 0.0
  %1704 = vmatprep.subr.mxu0 0.0
  %1705 = vmatpush1.msra.mxu0 0.0
  %1706 = vmatprep.subr.mxu0 0.0
  %1707 = vmatpush1.msra.mxu0 0.0
  %1708 = vmatprep.subr.mxu0 0.0
  %1709 = vmatpush1.msra.mxu0 0.0
  %1710 = vmatprep.subr.mxu0 0.0
  %1711 = vmatpush1.msra.mxu0 %v53
  %1712 = vmatprep.subr.mxu0 0.0
  %1713 = vmatpush1.msra.mxu0 %v52
  %1714 = vmatprep.subr.mxu0 0.0
  %1715 = vmatpush1.msra.mxu0 %v51
  %1716 = vmatprep.subr.mxu0 0.0
  %1717 = vmatpush1.msra.mxu0 %v50
  %1718 = vmatprep.subr.mxu0 0.0
  %1719 = vmatpush2.msra.mxu0 0.0
  %1720 = vmatprep.subr.mxu0 0.0
  %1721 = vmatpush2.msra.mxu0 0.0
  %1722 = vmatprep.subr.mxu0 0.0
  %1723 = vmatpush2.msra.mxu0 0.0
  %1724 = vmatprep.subr.mxu0 0.0
  %1725 = vmatpush2.msra.mxu0 0.0
  %1726 = vmatprep.subr.mxu0 0.0
  %1727 = vmatpush2.msra.mxu0 0.0
  %1728 = vmatprep.subr.mxu0 0.0
  %1729 = vmatpush2.msra.mxu0 0.0
  %1730 = vmatprep.subr.mxu0 0.0
  %1731 = vmatpush2.msra.mxu0 0.0
  %1732 = vmatprep.subr.mxu0 0.0
  %1733 = vmatpush2.msra.mxu0 0.0
  %1734 = vmatprep.subr.mxu0 0.0
  %1735 = vmatpush2.msra.mxu0 0.0
  %1736 = vmatprep.subr.mxu0 0.0
  %1737 = vmatpush2.msra.mxu0 0.0
  %1738 = vmatprep.subr.mxu0 0.0
  %1739 = vmatpush2.msra.mxu0 0.0
  %1740 = vmatprep.subr.mxu0 0.0
  %1741 = vmatpush2.msra.mxu0 0.0
  %1742 = vmatprep.subr.mxu0 0.0
  %1743 = vmatpush2.msra.mxu0 0.0
  %1744 = vmatprep.subr.mxu0 0.0
  %1745 = vmatpush2.msra.mxu0 0.0
  %1746 = vmatprep.subr.mxu0 0.0
  %1747 = vmatpush2.msra.mxu0 0.0
  %1748 = vmatprep.subr.mxu0 0.0
  %1749 = vmatpush2.msra.mxu0 0.0
  %1750 = vmatprep.mubr.f32.mxu0 0.0
  %1751 = vmatmul.mubr.f32.gmra.mxu0 %v1684
  %v1752 = vpop.f32.mrf.mxu0
  %v1753 = vadd.f32 %v1654, %v1752
  %v1754 = vpop.f32.mrf.mxu0
  %1755 = vdwg.mxu0
  %v1756 = vadd.f32 %v1753, %v59
  %v1757 = vxor.u32 %v1756, 2147483648
  %v1758 = vmul.f32 %v1757, 1.442695
  %v1759 = vpow.pop %v1758
  %v1760 = vadd.f32 %v1759, 1.0
  %v1761 = vrcp.pop %v1760
  %v1762 = vmul.f32 1.0, %v1761
  %v1763 = vtanh.pop %v1756
  %v1764 = vmul.f32 %v1762, %v1569
  %1766 = vrot.lane.b32.xlu0 %v1763, 64
  %v1767 = vpop.permute.xlu0 %1766
  %v1769 = vmul.f32 %v1762, %v1767
  %1771 = vrot.lane.b32.xlu0 %v1769, 32
  %v1772 = vpop.permute.xlu0 %1771
  %v1774 = vadd.f32 %v1764, %v1772
  %v1775 = vtanh.pop %v1774
  %1777 = vrot.lane.b32.xlu0 %v1775, 64
  %v1778 = vpop.permute.xlu0 %1777
  %v1780 = vmul.f32 %v1762, %v1778
  %v1781 = vld [vmem:[%s6] sm:$0xff]
  %v1782 = vld [vmem:[%s6 + $0x8] sm:$0xff]
  %v1783 = vld [vmem:[%s6 + $0x10] sm:$0xff]
  %v1784 = vld [vmem:[%s6 + $0x18] sm:$0xff]
  %v1785 = vld [vmem:[#allocation2] sm:$0x1]
  %v1787 = vlaneseq
  %v1788 = vshrl.u32 %v1787, 7
  %v1789 = vsub.s32 0, %v1788
  %v1790 = vrot.slane %v1785, %v1789
  %1793 = vrot.lane.b32.xlu0 %v1780, 32
  %v1794 = vpop.permute.xlu0 %1793
  %v1795 = vsel %vm248, %v1794, 0
  %1797 = vmatprep.subr.mxu0 0.0
  %1798 = vmatpush1.msra.mxu0 0.0
  %1799 = vmatprep.subr.mxu0 0.0
  %1800 = vmatpush1.msra.mxu0 0.0
  %1801 = vmatprep.subr.mxu0 0.0
  %1802 = vmatpush1.msra.mxu0 0.0
  %1803 = vmatprep.subr.mxu0 0.0
  %1804 = vmatpush1.msra.mxu0 0.0
  %1805 = vmatprep.subr.mxu0 0.0
  %1806 = vmatpush1.msra.mxu0 0.0
  %1807 = vmatprep.subr.mxu0 0.0
  %1808 = vmatpush1.msra.mxu0 0.0
  %1809 = vmatprep.subr.mxu0 0.0
  %1810 = vmatpush1.msra.mxu0 0.0
  %1811 = vmatprep.subr.mxu0 0.0
  %1812 = vmatpush1.msra.mxu0 0.0
  %1813 = vmatprep.subr.mxu0 0.0
  %1814 = vmatpush1.msra.mxu0 0.0
  %1815 = vmatprep.subr.mxu0 0.0
  %1816 = vmatpush1.msra.mxu0 0.0
  %1817 = vmatprep.subr.mxu0 0.0
  %1818 = vmatpush1.msra.mxu0 0.0
  %1819 = vmatprep.subr.mxu0 0.0
  %1820 = vmatpush1.msra.mxu0 0.0
  %1821 = vmatprep.subr.mxu0 0.0
  %1822 = vmatpush1.msra.mxu0 %v1784
  %1823 = vmatprep.subr.mxu0 0.0
  %1824 = vmatpush1.msra.mxu0 %v1783
  %1825 = vmatprep.subr.mxu0 0.0
  %1826 = vmatpush1.msra.mxu0 %v1782
  %1827 = vmatprep.subr.mxu0 0.0
  %1828 = vmatpush1.msra.mxu0 %v1781
  %1829 = vmatprep.subr.mxu0 0.0
  %1830 = vmatpush2.msra.mxu0 0.0
  %1831 = vmatprep.subr.mxu0 0.0
  %1832 = vmatpush2.msra.mxu0 0.0
  %1833 = vmatprep.subr.mxu0 0.0
  %1834 = vmatpush2.msra.mxu0 0.0
  %1835 = vmatprep.subr.mxu0 0.0
  %1836 = vmatpush2.msra.mxu0 0.0
  %1837 = vmatprep.subr.mxu0 0.0
  %1838 = vmatpush2.msra.mxu0 0.0
  %1839 = vmatprep.subr.mxu0 0.0
  %1840 = vmatpush2.msra.mxu0 0.0
  %1841 = vmatprep.subr.mxu0 0.0
  %1842 = vmatpush2.msra.mxu0 0.0
  %1843 = vmatprep.subr.mxu0 0.0
  %1844 = vmatpush2.msra.mxu0 0.0
  %1845 = vmatprep.subr.mxu0 0.0
  %1846 = vmatpush2.msra.mxu0 0.0
  %1847 = vmatprep.subr.mxu0 0.0
  %1848 = vmatpush2.msra.mxu0 0.0
  %1849 = vmatprep.subr.mxu0 0.0
  %1850 = vmatpush2.msra.mxu0 0.0
  %1851 = vmatprep.subr.mxu0 0.0
  %1852 = vmatpush2.msra.mxu0 0.0
  %1853 = vmatprep.subr.mxu0 0.0
  %1854 = vmatpush2.msra.mxu0 0.0
  %1855 = vmatprep.subr.mxu0 0.0
  %1856 = vmatpush2.msra.mxu0 0.0
  %1857 = vmatprep.subr.mxu0 0.0
  %1858 = vmatpush2.msra.mxu0 0.0
  %1859 = vmatprep.subr.mxu0 0.0
  %1860 = vmatpush2.msra.mxu0 0.0
  %1861 = vmatprep.mubr.f32.mxu0 0.0
  %1862 = vmatmul.mubr.f32.gmra.mxu0 %v1795
  %v1863 = vpop.f32.mrf.mxu0
  %v1864 = vadd.f32 %v1790, %v1863
  %v1865 = vpop.f32.mrf.mxu0
  %1866 = vdwg.mxu0
  %vm1867 = vcmask 7168
  %1868 = vst.msk [vmem:[%s8] sm:$0xff] %vm1867, %v1864
  // Predicated region
  $region34: #{electricity_net_forward.1} parent=0 // pred_check
    _
  $region35: #{electricity_net_forward.1} parent=0 // pred_check_branch
    %1870 = sbr.rel (0) target = $region37
  $region36: #{electricity_net_forward.1} parent=0 // pred_region
    _
  $region37: #{electricity_net_forward.1} parent=0 // pred_fallthru
    _
  // Predicated region
  $region38: #{electricity_net_forward.1} parent=0 // pred_check
    _
  $region39: #{electricity_net_forward.1} parent=0 // pred_check_branch
    %1872 = sbr.rel (0) target = $region41
  $region40: #{electricity_net_forward.1} parent=0 // pred_region
    _
  $region41: #{electricity_net_forward.1} parent=0 // pred_fallthru
    _

</llo_original>
